<compile_context>
chip_gen: v7x
topology: tpu7x:2x2x1
jax: 0.10.0
libtpu: 0.0.40
codegen_flags: <defaults>
</compile_context>

<pallas_src>
import jax
import jax.numpy as jnp
from jax.experimental import pallas as pl
from jax.experimental.pallas import tpu as pltpu


# -----------------------------------------------------------------------------
# Problem sizes (small but MXU/lane aligned: multiples of 128 on last two dims).
# -----------------------------------------------------------------------------
B = 8                 # graphs in the batch
NODES_PER_GRAPH = 28  # real nodes per graph (rest of N is padding)
N = 256               # padded total node count
DIN = 128             # input node-feature dim
DH = 128              # config['hidden_size']
F_APP = 8             # app features per graph
N_CLASSES = 4         # classifier output classes
FPAD = 128            # app+graph features padded to lane width
CPAD = 128            # classes padded to lane width (lane-dense store)
TM_CAP = 512          # max node-row tile (re-derive vs. 64 MiB VMEM on v7x for big N)

_VMEM_LIMIT = 32 * 1024 * 1024


# -----------------------------------------------------------------------------
# Fused kernel: GNN hidden layer + per-graph target pooling + classifier.
# grid = (N // TM,) over node-row tiles ("arbitrary": pooled output is resident).
# At demo shapes N // TM == 1, i.e. a single straight-line grid step.
# -----------------------------------------------------------------------------
def _fused_gnn_kernel(a_ref, x_ref, w_stack_ref, b_gnn_ref, mask_ref,
                      invcnt_ref, feat_ref, w_h_ref, w_f_ref, b_cls_ref,
                      out_ref, pool_acc):
    i = pl.program_id(0)
    tm = a_ref.shape[0]

    @pl.when(i == 0)
    def _():
        pool_acc[...] = jnp.zeros_like(pool_acc)

    # Neighbor aggregation: full-K bf16 A row-tile @ bf16 X -> f32 (MXU).
    ax = jnp.dot(a_ref[...], x_ref[...], preferred_element_type=jnp.float32)

    # Self rows for this tile come from the single resident X block.
    row0 = pl.multiple_of(i * tm, tm)
    x_self = x_ref[pl.ds(row0, tm), :]

    # One fused K = 2*Din contraction against stacked [W_neigh ; W_self]
    # (fills the 256-deep MXU on v6e/v7x instead of two half-depth pushes).
    cat = jnp.concatenate([ax.astype(jnp.bfloat16), x_self], axis=-1)
    h = jnp.dot(cat, w_stack_ref[...], preferred_element_type=jnp.float32)
    h = jnp.maximum(h + b_gnn_ref[...], 0.0).astype(jnp.bfloat16)  # f32 epilogue (v5e-safe)

    # Target-node pooling for this row tile: bf16 [B, tm] @ bf16 [tm, Dh] -> f32.
    pool_acc[...] += jnp.dot(mask_ref[...], h, preferred_element_type=jnp.float32)

    @pl.when(i == pl.num_programs(0) - 1)
    def _():
        gh = (pool_acc[...] * invcnt_ref[...]).astype(jnp.bfloat16)   # exact 1/count
        logits = jnp.dot(gh, w_h_ref[...], preferred_element_type=jnp.float32)
        logits = logits + jnp.dot(feat_ref[...], w_f_ref[...],
                                  preferred_element_type=jnp.float32)
        out_ref[...] = logits + b_cls_ref[...]                        # lane-dense [B, CPAD]


def fused_gnn_forward(a_norm, x, w_stack, b_gnn, tmask, inv_counts, feats,
                      w_h, w_f, b_cls, *, tm=None):
    n, din = x.shape
    dh = w_stack.shape[1]
    b = tmask.shape[0]
    fp = feats.shape[1]
    cp = w_h.shape[1]
    if tm is None:
        tm = min(n, TM_CAP)
    assert n % tm == 0 and tm % 8 == 0

    return pl.pallas_call(
        _fused_gnn_kernel,
        out_shape=jax.ShapeDtypeStruct((b, cp), jnp.float32),
        grid_spec=pltpu.PrefetchScalarGridSpec(
            num_scalar_prefetch=0,
            grid=(n // tm,),
            in_specs=[
                pl.BlockSpec((tm, n), lambda i: (i, 0)),        # A row tile (full-K)
                pl.BlockSpec((n, din), lambda i: (0, 0)),       # X           (resident)
                pl.BlockSpec((2 * din, dh), lambda i: (0, 0)),  # [W_neigh;W_self] (resident)
                pl.BlockSpec((1, dh), lambda i: (0, 0)),        # GNN bias    (resident)
                pl.BlockSpec((b, tm), lambda i: (0, i)),        # target-mask tile
                pl.BlockSpec((b, 1), lambda i: (0, 0)),         # 1/count     (resident)
                pl.BlockSpec((b, fp), lambda i: (0, 0)),        # app+graph feats (resident)
                pl.BlockSpec((dh, cp), lambda i: (0, 0)),       # W_h         (resident)
                pl.BlockSpec((fp, cp), lambda i: (0, 0)),       # W_feat      (resident)
                pl.BlockSpec((1, cp), lambda i: (0, 0)),        # classifier bias (resident)
            ],
            out_specs=pl.BlockSpec((b, cp), lambda i: (0, 0)),
            scratch_shapes=[pltpu.VMEM((b, dh), jnp.float32)],  # pooled accumulator
        ),
        compiler_params=pltpu.CompilerParams(
            dimension_semantics=("arbitrary",),
            vmem_limit_bytes=_VMEM_LIMIT,
        ),
    )(a_norm, x, w_stack, b_gnn, tmask, inv_counts, feats, w_h, w_f, b_cls)


# -----------------------------------------------------------------------------
# GNNBase.forward equivalent (is_gpa=True, use_app_feats=True,
# use_graph_feature=True, gnn_aggregate_type='mean').
# -----------------------------------------------------------------------------
def gnn_base_forward(params, a_norm, x, app_feats, node2graph, is_target, depth,
                     num_graphs, num_classes, gnn_aggregate_type="mean"):
    nb = num_graphs

    # unbatch_hidden bookkeeping (dgl.unbatch replacement, cheap JAX glue)
    membership = node2graph[:, None] == jnp.arange(nb, dtype=node2graph.dtype)[None, :]  # [N,B]
    tgt = membership & is_target[:, None]
    tmask = tgt.T.astype(jnp.bfloat16)                                    # [B, N]
    n_target = tgt.sum(axis=0).astype(jnp.float32)                        # [B]
    n_total = membership.sum(axis=0).astype(jnp.float32)                  # [B]
    d_max = jnp.max(jnp.where(membership, depth[:, None], -jnp.inf), axis=0)
    d_max = jnp.where(n_total > 0, d_max, 0.0)                            # guard empty graphs
    graph_feat = jnp.stack([d_max, n_target, n_total], axis=1)            # [B, 3]

    if gnn_aggregate_type == "mean":
        inv_counts = (1.0 / jnp.maximum(n_target, 1.0))[:, None].astype(jnp.float32)
    elif gnn_aggregate_type == "sum":
        inv_counts = jnp.ones((nb, 1), jnp.float32)
    else:
        # TODO(synk): 'root' aggregation needs an is_root node mask; not wired here.
        raise NotImplementedError(gnn_aggregate_type)

    # feature_final = cat(app_feats, graph_feat); zero-pad to FPAD lanes
    feats = jnp.concatenate([app_feats, graph_feat], axis=1)
    fpad = params["w_feat"].shape[0]
    feats = jnp.pad(feats, ((0, 0), (0, fpad - feats.shape[1]))).astype(jnp.bfloat16)

    # Stack the GNN weights once so the kernel runs a single K=2*Din contraction.
    w_stack = jnp.concatenate([params["w_neigh"], params["w_self"]], axis=0)  # [2*Din, Dh]

    logits_pad = fused_gnn_forward(a_norm, x, w_stack, params["b_gnn"], tmask,
                                   inv_counts, feats, params["w_h"],
                                   params["w_feat"], params["b_cls"])
    return logits_pad[:, :num_classes], None


# -----------------------------------------------------------------------------
# Pure-JAX reference (mirrors the bf16 casts of the kernel path).
# -----------------------------------------------------------------------------
def reference_forward(params, a_norm, x, app_feats, node2graph, is_target, depth,
                      num_graphs, num_classes):
    f32 = lambda t: t.astype(jnp.float32)
    hp = jax.lax.Precision.HIGHEST

    ax = jnp.dot(f32(a_norm), f32(x), precision=hp)
    h = jnp.maximum(
        jnp.dot(f32(ax.astype(jnp.bfloat16)), f32(params["w_neigh"]), precision=hp)
        + jnp.dot(f32(x), f32(params["w_self"]), precision=hp)
        + params["b_gnn"], 0.0)
    h16 = f32(h.astype(jnp.bfloat16))

    nb = num_graphs
    membership = node2graph[:, None] == jnp.arange(nb, dtype=node2graph.dtype)[None, :]
    tgt = membership & is_target[:, None]
    n_target = tgt.sum(axis=0).astype(jnp.float32)
    n_total = membership.sum(axis=0).astype(jnp.float32)
    d_max = jnp.max(jnp.where(membership, depth[:, None], -jnp.inf), axis=0)
    d_max = jnp.where(n_total > 0, d_max, 0.0)
    graph_feat = jnp.stack([d_max, n_target, n_total], axis=1)

    gh = jnp.dot(f32(tgt.T.astype(jnp.bfloat16)), h16, precision=hp)
    gh = gh * (1.0 / jnp.maximum(n_target, 1.0))[:, None]

    feats = jnp.concatenate([app_feats, graph_feat], axis=1)
    fpad = params["w_feat"].shape[0]
    feats = f32(jnp.pad(feats, ((0, 0), (0, fpad - feats.shape[1]))).astype(jnp.bfloat16))

    logits = (jnp.dot(f32(gh.astype(jnp.bfloat16)), f32(params["w_h"]), precision=hp)
              + jnp.dot(feats, f32(params["w_feat"]), precision=hp)
              + params["b_cls"])
    return logits[:, :num_classes], None


# -----------------------------------------------------------------------------
# Deterministic example inputs + run.
# -----------------------------------------------------------------------------
if __name__ == "__main__":
    key = jax.random.PRNGKey(0)
    (k_x, k_e, k_t, k_d, k_app,
     k_ws, k_wn, k_bg, k_wc, k_bc) = jax.random.split(key, 10)

    # node -> graph assignment; padding nodes get sentinel id B (out of range)
    node2graph = jnp.concatenate([
        jnp.repeat(jnp.arange(B, dtype=jnp.int32), NODES_PER_GRAPH),
        jnp.full((N - B * NODES_PER_GRAPH,), B, dtype=jnp.int32),
    ])

    # target-node flags (>=1 target per graph), zeroed on padding
    is_target = jax.random.bernoulli(k_t, 0.3, (N,))
    is_target = is_target.at[jnp.arange(B) * NODES_PER_GRAPH].set(True)
    is_target = is_target & (node2graph < B)

    depth = jax.random.randint(k_d, (N,), 0, 10).astype(jnp.float32)
    depth = jnp.where(node2graph < B, depth, 0.0)

    # block-diagonal, row-normalized adjacency (mean aggregator) with self-loops
    same = (node2graph[:, None] == node2graph[None, :]) & (node2graph[:, None] < B)
    edges = jax.random.bernoulli(k_e, 0.15, (N, N))
    adj = (same & (edges | jnp.eye(N, dtype=bool))).astype(jnp.float32)
    deg = jnp.maximum(adj.sum(axis=1, keepdims=True), 1.0)
    a_norm = (adj / deg).astype(jnp.bfloat16)

    x = jax.random.normal(k_x, (N, DIN)).astype(jnp.bfloat16)
    app_feats = jax.random.normal(k_app, (B, F_APP)).astype(jnp.float32)

    # GNN layer + Linear classifier params (classifier padded to lane-dense shapes)
    w_cls_full = 0.1 * jax.random.normal(k_wc, (DH + F_APP + 3, N_CLASSES))
    b_cls_full = 0.1 * jax.random.normal(k_bc, (N_CLASSES,))
    params = {
        "w_self": (0.1 * jax.random.normal(k_ws, (DIN, DH))).astype(jnp.bfloat16),
        "w_neigh": (0.1 * jax.random.normal(k_wn, (DIN, DH))).astype(jnp.bfloat16),
        "b_gnn": (0.1 * jax.random.normal(k_bg, (1, DH))).astype(jnp.float32),
        "w_h": jnp.zeros((DH, CPAD), jnp.float32)
                 .at[:, :N_CLASSES].set(w_cls_full[:DH]).astype(jnp.bfloat16),
        "w_feat": jnp.zeros((FPAD, CPAD), jnp.float32)
                    .at[:F_APP + 3, :N_CLASSES].set(w_cls_full[DH:]).astype(jnp.bfloat16),
        "b_cls": jnp.zeros((1, CPAD), jnp.float32).at[0, :N_CLASSES].set(b_cls_full),
    }

    logits, _ = gnn_base_forward(params, a_norm, x, app_feats, node2graph,
                                 is_target, depth, B, N_CLASSES)
    logits = jax.block_until_ready(logits)

    ref_logits, _ = reference_forward(params, a_norm, x, app_feats, node2graph,
                                      is_target, depth, B, N_CLASSES)
    ref_logits = jax.block_until_ready(ref_logits)

    if not jnp.allclose(logits, ref_logits, rtol=1e-2, atol=1e-2):
        raise AssertionError(
            f"mismatch vs reference, max abs err = {jnp.max(jnp.abs(logits - ref_logits))}")

    print("KERNEL_OK")
</pallas_src>

<mosaic_0001>
module attributes {stable_mosaic.version = 11 : i64} {
  func.func @_fused_gnn_kernel(%arg0: i32, %arg1: memref<256x256xbf16, #tpu.memory_space<vmem>>, %arg2: memref<256x128xbf16, #tpu.memory_space<vmem>>, %arg3: memref<256x128xbf16, #tpu.memory_space<vmem>>, %arg4: memref<1x128xf32, #tpu.memory_space<vmem>>, %arg5: memref<8x256xbf16, #tpu.memory_space<vmem>>, %arg6: memref<8x1xf32, #tpu.memory_space<vmem>>, %arg7: memref<8x128xbf16, #tpu.memory_space<vmem>>, %arg8: memref<128x128xbf16, #tpu.memory_space<vmem>>, %arg9: memref<128x128xbf16, #tpu.memory_space<vmem>>, %arg10: memref<1x128xf32, #tpu.memory_space<vmem>>, %arg11: memref<8x128xf32, #tpu.memory_space<vmem>>, %arg12: memref<8x128xf32, #tpu.memory_space<vmem>>) attributes {dimension_semantics = [#tpu.dimension_semantics<arbitrary>], iteration_bounds = array<i64: 1>, scalar_prefetch = 0 : i64, scratch_operands = 1 : i64, tpu.core_type = #tpu.core_type<tc>, window_params = [{transform_indices = @transform_0, window_bounds = array<i64: 256, 256>}, {pipeline_mode = #tpu.pipeline_mode<synchronous>, transform_indices = @transform_1, window_bounds = array<i64: 256, 128>}, {pipeline_mode = #tpu.pipeline_mode<synchronous>, transform_indices = @transform_2, window_bounds = array<i64: 256, 128>}, {pipeline_mode = #tpu.pipeline_mode<synchronous>, transform_indices = @transform_3, window_bounds = array<i64: 1, 128>}, {transform_indices = @transform_4, window_bounds = array<i64: 8, 256>}, {pipeline_mode = #tpu.pipeline_mode<synchronous>, transform_indices = @transform_5, window_bounds = array<i64: 8, 1>}, {pipeline_mode = #tpu.pipeline_mode<synchronous>, transform_indices = @transform_6, window_bounds = array<i64: 8, 128>}, {pipeline_mode = #tpu.pipeline_mode<synchronous>, transform_indices = @transform_7, window_bounds = array<i64: 128, 128>}, {pipeline_mode = #tpu.pipeline_mode<synchronous>, transform_indices = @transform_8, window_bounds = array<i64: 128, 128>}, {pipeline_mode = #tpu.pipeline_mode<synchronous>, transform_indices = @transform_9, window_bounds = array<i64: 1, 128>}, {pipeline_mode = #tpu.pipeline_mode<synchronous>, transform_indices = @transform_10, window_bounds = array<i64: 8, 128>}]} {
    %c0_i32 = arith.constant 0 : i32
    %0 = arith.cmpi eq, %arg0, %c0_i32 : i32
    %1 = arith.extui %0 : i1 to i32
    %c0_i32_0 = arith.constant 0 : i32
    %2 = arith.cmpi ne, %1, %c0_i32_0 : i32
    scf.if %2 {
      %cst_20 = arith.constant 0.000000e+00 : f32
      %28 = vector.broadcast %cst_20 : f32 to vector<8x128xf32>
      %c0_21 = arith.constant 0 : index
      %c0_22 = arith.constant 0 : index
      %29 = vector.load %arg12[%c0_21, %c0_22] : memref<8x128xf32, #tpu.memory_space<vmem>>, vector<8x128xf32>
      tpu.vector_store %arg12[%c0_21, %c0_22], %28 {strides = array<i32>} : memref<8x128xf32, #tpu.memory_space<vmem>>, vector<8x128xf32>,
    } else {
    }
    %c0 = arith.constant 0 : index
    %c0_1 = arith.constant 0 : index
    %3 = vector.load %arg1[%c0, %c0_1] : memref<256x256xbf16, #tpu.memory_space<vmem>>, vector<256x256xbf16>
    %c0_2 = arith.constant 0 : index
    %c0_3 = arith.constant 0 : index
    %4 = vector.load %arg2[%c0_2, %c0_3] : memref<256x128xbf16, #tpu.memory_space<vmem>>, vector<256x128xbf16>
    %cst = arith.constant dense<0.000000e+00> : vector<256x128xf32>
    %5 = tpu.matmul %3, %4, %cst {dimension_numbers = #tpu.dot_dimension_numbers<[1], [0], [0], [1], [0, 0, 1, 1], [], []>} : vector<256x256xbf16>, vector<256x128xbf16>, vector<256x128xf32> -> vector<256x128xf32>
    %c256_i32 = arith.constant 256 : i32
    %6 = arith.muli %arg0, %c256_i32 : i32
    %7 = tpu.assume_multiple %6, 256 : i32
    %8 = arith.index_cast %7 : i32 to index
    %c0_4 = arith.constant 0 : index
    %9 = vector.load %arg2[%8, %c0_4] : memref<256x128xbf16, #tpu.memory_space<vmem>>, vector<256x128xbf16>
    %10 = arith.truncf %5 : vector<256x128xf32> to vector<256x128xbf16>
    %11 = tpu.concatenate %10, %9 in 1 : vector<256x128xbf16>, vector<256x128xbf16> -> vector<256x256xbf16>
    %c0_5 = arith.constant 0 : index
    %c0_6 = arith.constant 0 : index
    %12 = vector.load %arg3[%c0_5, %c0_6] : memref<256x128xbf16, #tpu.memory_space<vmem>>, vector<256x128xbf16>
    %cst_7 = arith.constant dense<0.000000e+00> : vector<256x128xf32>
    %13 = tpu.matmul %11, %12, %cst_7 {dimension_numbers = #tpu.dot_dimension_numbers<[1], [0], [0], [1], [0, 0, 1, 1], [], []>} : vector<256x256xbf16>, vector<256x128xbf16>, vector<256x128xf32> -> vector<256x128xf32>
    %c0_8 = arith.constant 0 : index
    %c0_9 = arith.constant 0 : index
    %14 = vector.load %arg4[%c0_8, %c0_9] : memref<1x128xf32, #tpu.memory_space<vmem>>, vector<1x128xf32>
    %15 = vector.broadcast %14 : vector<1x128xf32> to vector<256x128xf32>
    %16 = arith.addf %13, %15 : vector<256x128xf32>
    %cst_10 = arith.constant 0.000000e+00 : f32
    %17 = vector.broadcast %cst_10 : f32 to vector<256x128xf32>
    %18 = arith.maximumf %16, %17 : vector<256x128xf32>
    %19 = arith.truncf %18 : vector<256x128xf32> to vector<256x128xbf16>
    %c0_11 = arith.constant 0 : index
    %c0_12 = arith.constant 0 : index
    %20 = vector.load %arg12[%c0_11, %c0_12] : memref<8x128xf32, #tpu.memory_space<vmem>>, vector<8x128xf32>
    %c0_13 = arith.constant 0 : index
    %c0_14 = arith.constant 0 : index
    %21 = vector.load %arg5[%c0_13, %c0_14] : memref<8x256xbf16, #tpu.memory_space<vmem>>, vector<8x256xbf16>
    %cst_15 = arith.constant dense<0.000000e+00> : vector<8x128xf32>
    %22 = tpu.matmul %21, %19, %cst_15 {dimension_numbers = #tpu.dot_dimension_numbers<[1], [0], [0], [1], [0, 0, 1, 1], [], []>} : vector<8x256xbf16>, vector<256x128xbf16>, vector<8x128xf32> -> vector<8x128xf32>
    %23 = arith.addf %20, %22 : vector<8x128xf32>
    %c0_16 = arith.constant 0 : index
    %c0_17 = arith.constant 0 : index
    %24 = vector.load %arg12[%c0_16, %c0_17] : memref<8x128xf32, #tpu.memory_space<vmem>>, vector<8x128xf32>
    tpu.vector_store %arg12[%c0_16, %c0_17], %23 {strides = array<i32>} : memref<8x128xf32, #tpu.memory_space<vmem>>, vector<8x128xf32>,
    %c0_i32_18 = arith.constant 0 : i32
    %25 = arith.cmpi eq, %arg0, %c0_i32_18 : i32
    %26 = arith.extui %25 : i1 to i32
    %c0_i32_19 = arith.constant 0 : i32
    %27 = arith.cmpi ne, %26, %c0_i32_19 : i32
    scf.if %27 {
      %c0_20 = arith.constant 0 : index
      %c0_21 = arith.constant 0 : index
      %28 = vector.load %arg12[%c0_20, %c0_21] : memref<8x128xf32, #tpu.memory_space<vmem>>, vector<8x128xf32>
      %c0_22 = arith.constant 0 : index
      %c0_23 = arith.constant 0 : index
      %29 = vector.load %arg6[%c0_22, %c0_23] : memref<8x1xf32, #tpu.memory_space<vmem>>, vector<8x1xf32>
      %30 = vector.broadcast %29 : vector<8x1xf32> to vector<8x128xf32>
      %31 = arith.mulf %28, %30 : vector<8x128xf32>
      %32 = arith.truncf %31 : vector<8x128xf32> to vector<8x128xbf16>
      %c0_24 = arith.constant 0 : index
      %c0_25 = arith.constant 0 : index
      %33 = vector.load %arg8[%c0_24, %c0_25] : memref<128x128xbf16, #tpu.memory_space<vmem>>, vector<128x128xbf16>
      %cst_26 = arith.constant dense<0.000000e+00> : vector<8x128xf32>
      %34 = tpu.matmul %32, %33, %cst_26 {dimension_numbers = #tpu.dot_dimension_numbers<[1], [0], [0], [1], [0, 0, 1, 1], [], []>} : vector<8x128xbf16>, vector<128x128xbf16>, vector<8x128xf32> -> vector<8x128xf32>
      %c0_27 = arith.constant 0 : index
      %c0_28 = arith.constant 0 : index
      %35 = vector.load %arg7[%c0_27, %c0_28] : memref<8x128xbf16, #tpu.memory_space<vmem>>, vector<8x128xbf16>
      %c0_29 = arith.constant 0 : index
      %c0_30 = arith.constant 0 : index
      %36 = vector.load %arg9[%c0_29, %c0_30] : memref<128x128xbf16, #tpu.memory_space<vmem>>, vector<128x128xbf16>
      %cst_31 = arith.constant dense<0.000000e+00> : vector<8x128xf32>
      %37 = tpu.matmul %35, %36, %cst_31 {dimension_numbers = #tpu.dot_dimension_numbers<[1], [0], [0], [1], [0, 0, 1, 1], [], []>} : vector<8x128xbf16>, vector<128x128xbf16>, vector<8x128xf32> -> vector<8x128xf32>
      %38 = arith.addf %34, %37 : vector<8x128xf32>
      %c0_32 = arith.constant 0 : index
      %c0_33 = arith.constant 0 : index
      %39 = vector.load %arg10[%c0_32, %c0_33] : memref<1x128xf32, #tpu.memory_space<vmem>>, vector<1x128xf32>
      %40 = vector.broadcast %39 : vector<1x128xf32> to vector<8x128xf32>
      %41 = arith.addf %38, %40 : vector<8x128xf32>
      %c0_34 = arith.constant 0 : index
      %c0_35 = arith.constant 0 : index
      %42 = vector.load %arg11[%c0_34, %c0_35] : memref<8x128xf32, #tpu.memory_space<vmem>>, vector<8x128xf32>
      tpu.vector_store %arg11[%c0_34, %c0_35], %41 {strides = array<i32>} : memref<8x128xf32, #tpu.memory_space<vmem>>, vector<8x128xf32>,
    } else {
    }
    return
  }
  func.func @transform_0(%arg0: i32) -> (i32, i32) {
    %c0_i32 = arith.constant 0 : i32
    %c0_i32_0 = arith.constant 0 : i32
    return %arg0, %c0_i32 : i32, i32
  }
  func.func @transform_1(%arg0: i32) -> (i32, i32) {
    %c0_i32 = arith.constant 0 : i32
    %c0_i32_0 = arith.constant 0 : i32
    %c0_i32_1 = arith.constant 0 : i32
    return %c0_i32, %c0_i32_0 : i32, i32
  }
  func.func @transform_2(%arg0: i32) -> (i32, i32) {
    %c0_i32 = arith.constant 0 : i32
    %c0_i32_0 = arith.constant 0 : i32
    %c0_i32_1 = arith.constant 0 : i32
    return %c0_i32, %c0_i32_0 : i32, i32
  }
  func.func @transform_3(%arg0: i32) -> (i32, i32) {
    %c0_i32 = arith.constant 0 : i32
    %c0_i32_0 = arith.constant 0 : i32
    %c0_i32_1 = arith.constant 0 : i32
    return %c0_i32, %c0_i32_0 : i32, i32
  }
  func.func @transform_4(%arg0: i32) -> (i32, i32) {
    %c0_i32 = arith.constant 0 : i32
    %c0_i32_0 = arith.constant 0 : i32
    return %c0_i32, %arg0 : i32, i32
  }
  func.func @transform_5(%arg0: i32) -> (i32, i32) {
    %c0_i32 = arith.constant 0 : i32
    %c0_i32_0 = arith.constant 0 : i32
    %c0_i32_1 = arith.constant 0 : i32
    return %c0_i32, %c0_i32_0 : i32, i32
  }
  func.func @transform_6(%arg0: i32) -> (i32, i32) {
    %c0_i32 = arith.constant 0 : i32
    %c0_i32_0 = arith.constant 0 : i32
    %c0_i32_1 = arith.constant 0 : i32
    return %c0_i32, %c0_i32_0 : i32, i32
  }
  func.func @transform_7(%arg0: i32) -> (i32, i32) {
    %c0_i32 = arith.constant 0 : i32
    %c0_i32_0 = arith.constant 0 : i32
    %c0_i32_1 = arith.constant 0 : i32
    return %c0_i32, %c0_i32_0 : i32, i32
  }
  func.func @transform_8(%arg0: i32) -> (i32, i32) {
    %c0_i32 = arith.constant 0 : i32
    %c0_i32_0 = arith.constant 0 : i32
    %c0_i32_1 = arith.constant 0 : i32
    return %c0_i32, %c0_i32_0 : i32, i32
  }
  func.func @transform_9(%arg0: i32) -> (i32, i32) {
    %c0_i32 = arith.constant 0 : i32
    %c0_i32_0 = arith.constant 0 : i32
    %c0_i32_1 = arith.constant 0 : i32
    return %c0_i32, %c0_i32_0 : i32, i32
  }
  func.func @transform_10(%arg0: i32) -> (i32, i32) {
    %c0_i32 = arith.constant 0 : i32
    %c0_i32_0 = arith.constant 0 : i32
    %c0_i32_1 = arith.constant 0 : i32
    return %c0_i32, %c0_i32_0 : i32, i32
  }
}

</mosaic_0001>

<llo_original>
// kernel: tpu_custom_call.1
$region0: #{tpu_custom_call.1}
  #allocation0 [shape = 'u32[]', space=smem, size = 0x4, offset = 0x4, fixed_abs, tag = 'smem constant byte address 0x4 - core index']
  #allocation1 [shape = 'u32[144,128]{1,0:T(1,128)}', space=vmem, size = 0x12000, scoped, tag = 'internal scratch']
  #allocation2 [shape = 'f32[8,128]{1,0:T(8,128)}', space=vmem, size = 0x1000, scoped, tag = 'scratch operand']
  %s0 = inlined_call_operand.hbm [shape: bf16[256,256], index: 0, kind: input, shape index: {}]
  %s1 = inlined_call_operand.hbm [shape: bf16[256,128], index: 1, kind: input, shape index: {}]
  %s2 = inlined_call_operand.hbm [shape: bf16[256,128], index: 2, kind: input, shape index: {}]
  %s3 = inlined_call_operand.vmem [shape: f32[1,128], index: 3, kind: input, shape index: {}]
  %s4 = inlined_call_operand.vmem [shape: bf16[8,256], index: 4, kind: input, shape index: {}]
  %s5 = inlined_call_operand.vmem [shape: f32[8,1], index: 5, kind: input, shape index: {}]
  %s6 = inlined_call_operand.vmem [shape: bf16[8,128], index: 6, kind: input, shape index: {}]
  %s7 = inlined_call_operand.hbm [shape: bf16[128,128], index: 7, kind: input, shape index: {}]
  %s8 = inlined_call_operand.hbm [shape: bf16[128,128], index: 8, kind: input, shape index: {}]
  %s9 = inlined_call_operand.vmem [shape: f32[1,128], index: 9, kind: input, shape index: {}]
  %s10 = inlined_call_operand.hbm [shape: f32[8,128], index: 10, kind: output, shape index: {}]
  %s11 = sld [smem:[#allocation0]]
  $region78: #{tpu_custom_call.1} parent=0
    _
  %s13 = ssub.s32 1, %s11
  %s14 = scalar_select 0, %s13, %s11
  $region1: #{tpu_custom_call.1} parent=0
    #allocation3 [shape = 'u8[131072]{0}', space=vmem, size = 0x20000, scoped, tag = 'input window, operand 0, single buffered']
    #allocation4 [shape = 's32[1]{0}', space=sflag, size = 0x4, scoped, tag = 'scoped memory for tpu_custom_call.1']
    #allocation5 [shape = 's32[1]{0}', space=sflag, size = 0x4, scoped, tag = 'scoped memory for tpu_custom_call.1']
    #allocation6 [shape = 'u8[65536]{0}', space=vmem, size = 0x10000, scoped, tag = 'input window, operand 1, single buffered']
    #allocation7 [shape = 's32[1]{0}', space=sflag, size = 0x4, scoped, tag = 'scoped memory for tpu_custom_call.1']
    #allocation8 [shape = 'u8[65536]{0}', space=vmem, size = 0x10000, scoped, tag = 'input window, operand 2, single buffered']
    #allocation9 [shape = 'u8[32768]{0}', space=vmem, size = 0x8000, scoped, tag = 'input window, operand 7, single buffered']
    #allocation10 [shape = 's32[1]{0}', space=sflag, size = 0x4, scoped, tag = 'scoped memory for tpu_custom_call.1']
    #allocation11 [shape = 'u8[32768]{0}', space=vmem, size = 0x8000, scoped, tag = 'input window, operand 8, single buffered']
    #allocation12 [shape = 'u8[4096]{0}', space=vmem, size = 0x1000, scoped, tag = 'output window, operand 0, single buffered']
    %15 = vsyncpa [#allocation4], 0
    %16 = vsyncpa [#allocation7], 0
    %17 = vsyncpa [#allocation10], 0
    %18 = vsyncpa [#allocation5], 0
    // Predicated region
    $region2: #{tpu_custom_call.1} parent=1 // pred_check
      _
    $region3: #{tpu_custom_call.1} parent=1 // pred_check_branch
      %20 = sbr.rel (0) target = $region5
    $region4: #{tpu_custom_call.1} parent=1 // pred_region
      %s22 = ssub.s32 4096, 4096
      %23 = vsyncadd [#allocation4], %s22
      %s24 = sshll.u32 [#allocation3], 4
      %s25 = int_to_ptr.vmem [resolvable:$true] %s24
      %30 = dma.hbm_to_vmem [thread:$0]  %s0, 4096, %s25, [#allocation4], 128, 128, 8
    $region5: #{tpu_custom_call.1} parent=1 // pred_fallthru
      _
    // Predicated region
    $region6: #{tpu_custom_call.1} parent=1 // pred_check
      _
    $region7: #{tpu_custom_call.1} parent=1 // pred_check_branch
      %32 = sbr.rel (0) target = $region9
    $region8: #{tpu_custom_call.1} parent=1 // pred_region
      %s34 = ssub.s32 2048, 2048
      %35 = vsyncadd [#allocation7], %s34
      %s36 = sshll.u32 [#allocation6], 4
      %s37 = int_to_ptr.vmem [resolvable:$true] %s36
      %42 = dma.hbm_to_vmem [thread:$0]  %s1, 2048, %s37, [#allocation7], 64, 64, 4
    $region9: #{tpu_custom_call.1} parent=1 // pred_fallthru
      _
    // Predicated region
    $region10: #{tpu_custom_call.1} parent=1 // pred_check
      _
    $region11: #{tpu_custom_call.1} parent=1 // pred_check_branch
      %44 = sbr.rel (0) target = $region13
    $region12: #{tpu_custom_call.1} parent=1 // pred_region
      %s46 = ssub.s32 2048, 2048
      %47 = vsyncadd [#allocation7], %s46
      %s48 = sshll.u32 [#allocation8], 4
      %s49 = int_to_ptr.vmem [resolvable:$true] %s48
      %54 = dma.hbm_to_vmem [thread:$0]  %s2, 2048, %s49, [#allocation7], 64, 64, 4
    $region13: #{tpu_custom_call.1} parent=1 // pred_fallthru
      _
    // Predicated region
    $region14: #{tpu_custom_call.1} parent=1 // pred_check
      _
    $region15: #{tpu_custom_call.1} parent=1 // pred_check_branch
      %56 = sbr.rel (0) target = $region17
    $region16: #{tpu_custom_call.1} parent=1 // pred_region
      _
    $region17: #{tpu_custom_call.1} parent=1 // pred_fallthru
      _
    // Predicated region
    $region18: #{tpu_custom_call.1} parent=1 // pred_check
      _
    $region19: #{tpu_custom_call.1} parent=1 // pred_check_branch
      %58 = sbr.rel (0) target = $region21
    $region20: #{tpu_custom_call.1} parent=1 // pred_region
      _
    $region21: #{tpu_custom_call.1} parent=1 // pred_fallthru
      _
    // Predicated region
    $region22: #{tpu_custom_call.1} parent=1 // pred_check
      _
    $region23: #{tpu_custom_call.1} parent=1 // pred_check_branch
      %60 = sbr.rel (0) target = $region25
    $region24: #{tpu_custom_call.1} parent=1 // pred_region
      _
    $region25: #{tpu_custom_call.1} parent=1 // pred_fallthru
      _
    // Predicated region
    $region26: #{tpu_custom_call.1} parent=1 // pred_check
      _
    $region27: #{tpu_custom_call.1} parent=1 // pred_check_branch
      %62 = sbr.rel (0) target = $region29
    $region28: #{tpu_custom_call.1} parent=1 // pred_region
      _
    $region29: #{tpu_custom_call.1} parent=1 // pred_fallthru
      _
    // Predicated region
    $region30: #{tpu_custom_call.1} parent=1 // pred_check
      _
    $region31: #{tpu_custom_call.1} parent=1 // pred_check_branch
      %64 = sbr.rel (0) target = $region33
    $region32: #{tpu_custom_call.1} parent=1 // pred_region
      %s66 = ssub.s32 1024, 1024
      %67 = vsyncadd [#allocation10], %s66
      %s68 = sshll.u32 [#allocation9], 4
      %s69 = int_to_ptr.vmem [resolvable:$true] %s68
      %74 = dma.hbm_to_vmem [thread:$0]  %s7, 1024, %s69, [#allocation10], 64, 64, 4
    $region33: #{tpu_custom_call.1} parent=1 // pred_fallthru
      _
    // Predicated region
    $region34: #{tpu_custom_call.1} parent=1 // pred_check
      _
    $region35: #{tpu_custom_call.1} parent=1 // pred_check_branch
      %76 = sbr.rel (0) target = $region37
    $region36: #{tpu_custom_call.1} parent=1 // pred_region
      %s78 = ssub.s32 1024, 1024
      %79 = vsyncadd [#allocation10], %s78
      %s80 = sshll.u32 [#allocation11], 4
      %s81 = int_to_ptr.vmem [resolvable:$true] %s80
      %86 = dma.hbm_to_vmem [thread:$0]  %s8, 1024, %s81, [#allocation10], 64, 64, 4
    $region37: #{tpu_custom_call.1} parent=1 // pred_fallthru
      _
    // Predicated region
    $region38: #{tpu_custom_call.1} parent=1 // pred_check
      _
    $region39: #{tpu_custom_call.1} parent=1 // pred_check_branch
      %88 = sbr.rel (0) target = $region41
    $region40: #{tpu_custom_call.1} parent=1 // pred_region
      _
    $region41: #{tpu_custom_call.1} parent=1 // pred_fallthru
      _
    // Predicated region
    $region42: #{tpu_custom_call.1} parent=1 // pred_check
      _
    $region43: #{tpu_custom_call.1} parent=1 // pred_check_branch
      %90 = sbr.rel (0) target = $region45
    $region44: #{tpu_custom_call.1} parent=1 // pred_region
      %91 = dma.done [#allocation4], 4096
    $region45: #{tpu_custom_call.1} parent=1 // pred_fallthru
      _
    // Predicated region
    $region46: #{tpu_custom_call.1} parent=1 // pred_check
      _
    $region47: #{tpu_custom_call.1} parent=1 // pred_check_branch
      %93 = sbr.rel (0) target = $region49
    $region48: #{tpu_custom_call.1} parent=1 // pred_region
      %94 = dma.done [#allocation7], 2048
    $region49: #{tpu_custom_call.1} parent=1 // pred_fallthru
      _
    // Predicated region
    $region50: #{tpu_custom_call.1} parent=1 // pred_check
      _
    $region51: #{tpu_custom_call.1} parent=1 // pred_check_branch
      %96 = sbr.rel (0) target = $region53
    $region52: #{tpu_custom_call.1} parent=1 // pred_region
      %97 = dma.done [#allocation7], 2048
    $region53: #{tpu_custom_call.1} parent=1 // pred_fallthru
      _
    // Predicated region
    $region54: #{tpu_custom_call.1} parent=1 // pred_check
      _
    $region55: #{tpu_custom_call.1} parent=1 // pred_check_branch
      %99 = sbr.rel (0) target = $region57
    $region56: #{tpu_custom_call.1} parent=1 // pred_region
      %100 = dma.done [#allocation10], 1024
    $region57: #{tpu_custom_call.1} parent=1 // pred_fallthru
      _
    // Predicated region
    $region58: #{tpu_custom_call.1} parent=1 // pred_check
      _
    $region59: #{tpu_custom_call.1} parent=1 // pred_check_branch
      %102 = sbr.rel (0) target = $region61
    $region60: #{tpu_custom_call.1} parent=1 // pred_region
      %103 = dma.done [#allocation10], 1024
    $region61: #{tpu_custom_call.1} parent=1 // pred_fallthru
      _
    %p105 = scmp.eq.s32.totalorder 0, 0
    // Predicated region
    $region62: #{tpu_custom_call.1} parent=1 // pred_check
      %p106 = pneg %p105
    $region63: #{tpu_custom_call.1} parent=1 // pred_check_branch
      %108 = sbr.rel (%p106) target = $region65
    $region64: #{tpu_custom_call.1} parent=1 // pred_region
      %109 = vst [vmem:[#allocation2] sm:$0xff] 0.0
    $region65: #{tpu_custom_call.1} parent=1 // pred_fallthru
      _
    %v110 = vld [vmem:[#allocation3] sm:$0xff]
    %v111 = vld [vmem:[#allocation3 + $0x8] sm:$0xff]
    %v112 = vld [vmem:[#allocation3 + $0x10] sm:$0xff]
    %v113 = vld [vmem:[#allocation3 + $0x18] sm:$0xff]
    %v114 = vld [vmem:[#allocation3 + $0x20] sm:$0xff]
    %v115 = vld [vmem:[#allocation3 + $0x28] sm:$0xff]
    %v116 = vld [vmem:[#allocation3 + $0x30] sm:$0xff]
    %v117 = vld [vmem:[#allocation3 + $0x38] sm:$0xff]
    %v118 = vld [vmem:[#allocation3 + $0x40] sm:$0xff]
    %v119 = vld [vmem:[#allocation3 + $0x48] sm:$0xff]
    %v120 = vld [vmem:[#allocation3 + $0x50] sm:$0xff]
    %v121 = vld [vmem:[#allocation3 + $0x58] sm:$0xff]
    %v122 = vld [vmem:[#allocation3 + $0x60] sm:$0xff]
    %v123 = vld [vmem:[#allocation3 + $0x68] sm:$0xff]
    %v124 = vld [vmem:[#allocation3 + $0x70] sm:$0xff]
    %v125 = vld [vmem:[#allocation3 + $0x78] sm:$0xff]
    %v126 = vld [vmem:[#allocation3 + $0x80] sm:$0xff]
    %v127 = vld [vmem:[#allocation3 + $0x88] sm:$0xff]
    %v128 = vld [vmem:[#allocation3 + $0x90] sm:$0xff]
    %v129 = vld [vmem:[#allocation3 + $0x98] sm:$0xff]
    %v130 = vld [vmem:[#allocation3 + $0xa0] sm:$0xff]
    %v131 = vld [vmem:[#allocation3 + $0xa8] sm:$0xff]
    %v132 = vld [vmem:[#allocation3 + $0xb0] sm:$0xff]
    %v133 = vld [vmem:[#allocation3 + $0xb8] sm:$0xff]
    %v134 = vld [vmem:[#allocation3 + $0xc0] sm:$0xff]
    %v135 = vld [vmem:[#allocation3 + $0xc8] sm:$0xff]
    %v136 = vld [vmem:[#allocation3 + $0xd0] sm:$0xff]
    %v137 = vld [vmem:[#allocation3 + $0xd8] sm:$0xff]
    %v138 = vld [vmem:[#allocation3 + $0xe0] sm:$0xff]
    %v139 = vld [vmem:[#allocation3 + $0xe8] sm:$0xff]
    %v140 = vld [vmem:[#allocation3 + $0xf0] sm:$0xff]
    %v141 = vld [vmem:[#allocation3 + $0xf8] sm:$0xff]
    %v142 = vld [vmem:[#allocation6] sm:$0xf]
    %v143 = vld [vmem:[#allocation6 + $0x4] sm:$0xf]
    %v144 = vld [vmem:[#allocation6 + $0x8] sm:$0xf]
    %v145 = vld [vmem:[#allocation6 + $0xc] sm:$0xf]
    %v146 = vld [vmem:[#allocation6 + $0x10] sm:$0xf]
    %v147 = vld [vmem:[#allocation6 + $0x14] sm:$0xf]
    %v148 = vld [vmem:[#allocation6 + $0x18] sm:$0xf]
    %v149 = vld [vmem:[#allocation6 + $0x1c] sm:$0xf]
    %v150 = vld [vmem:[#allocation6 + $0x20] sm:$0xf]
    %v151 = vld [vmem:[#allocation6 + $0x24] sm:$0xf]
    %v152 = vld [vmem:[#allocation6 + $0x28] sm:$0xf]
    %v153 = vld [vmem:[#allocation6 + $0x2c] sm:$0xf]
    %v154 = vld [vmem:[#allocation6 + $0x30] sm:$0xf]
    %v155 = vld [vmem:[#allocation6 + $0x34] sm:$0xf]
    %v156 = vld [vmem:[#allocation6 + $0x38] sm:$0xf]
    %v157 = vld [vmem:[#allocation6 + $0x3c] sm:$0xf]
    %v158 = vld [vmem:[#allocation6 + $0x40] sm:$0xf]
    %v159 = vld [vmem:[#allocation6 + $0x44] sm:$0xf]
    %v160 = vld [vmem:[#allocation6 + $0x48] sm:$0xf]
    %v161 = vld [vmem:[#allocation6 + $0x4c] sm:$0xf]
    %v162 = vld [vmem:[#allocation6 + $0x50] sm:$0xf]
    %v163 = vld [vmem:[#allocation6 + $0x54] sm:$0xf]
    %v164 = vld [vmem:[#allocation6 + $0x58] sm:$0xf]
    %v165 = vld [vmem:[#allocation6 + $0x5c] sm:$0xf]
    %v166 = vld [vmem:[#allocation6 + $0x60] sm:$0xf]
    %v167 = vld [vmem:[#allocation6 + $0x64] sm:$0xf]
    %v168 = vld [vmem:[#allocation6 + $0x68] sm:$0xf]
    %v169 = vld [vmem:[#allocation6 + $0x6c] sm:$0xf]
    %v170 = vld [vmem:[#allocation6 + $0x70] sm:$0xf]
    %v171 = vld [vmem:[#allocation6 + $0x74] sm:$0xf]
    %v172 = vld [vmem:[#allocation6 + $0x78] sm:$0xf]
    %v173 = vld [vmem:[#allocation6 + $0x7c] sm:$0xf]
    %v206 = vunpack.c.l.b16 %v110
    %v207 = vunpack.c.h.b16 %v110
    %v208 = vunpack.c.l.b16 %v111
    %v209 = vunpack.c.h.b16 %v111
    %v210 = vunpack.c.l.b16 %v112
    %v211 = vunpack.c.h.b16 %v112
    %v212 = vunpack.c.l.b16 %v113
    %v213 = vunpack.c.h.b16 %v113
    %v214 = vunpack.c.l.b16 %v114
    %v215 = vunpack.c.h.b16 %v114
    %v216 = vunpack.c.l.b16 %v115
    %v217 = vunpack.c.h.b16 %v115
    %v218 = vunpack.c.l.b16 %v116
    %v219 = vunpack.c.h.b16 %v116
    %v220 = vunpack.c.l.b16 %v117
    %v221 = vunpack.c.h.b16 %v117
    %v222 = vunpack.c.l.b16 %v118
    %v223 = vunpack.c.h.b16 %v118
    %v224 = vunpack.c.l.b16 %v119
    %v225 = vunpack.c.h.b16 %v119
    %v226 = vunpack.c.l.b16 %v120
    %v227 = vunpack.c.h.b16 %v120
    %v228 = vunpack.c.l.b16 %v121
    %v229 = vunpack.c.h.b16 %v121
    %v230 = vunpack.c.l.b16 %v122
    %v231 = vunpack.c.h.b16 %v122
    %v232 = vunpack.c.l.b16 %v123
    %v233 = vunpack.c.h.b16 %v123
    %v234 = vunpack.c.l.b16 %v124
    %v235 = vunpack.c.h.b16 %v124
    %v236 = vunpack.c.l.b16 %v125
    %v237 = vunpack.c.h.b16 %v125
    %v238 = vunpack.c.l.b16 %v126
    %v239 = vunpack.c.h.b16 %v126
    %v240 = vunpack.c.l.b16 %v127
    %v241 = vunpack.c.h.b16 %v127
    %v242 = vunpack.c.l.b16 %v128
    %v243 = vunpack.c.h.b16 %v128
    %v244 = vunpack.c.l.b16 %v129
    %v245 = vunpack.c.h.b16 %v129
    %v246 = vunpack.c.l.b16 %v130
    %v247 = vunpack.c.h.b16 %v130
    %v248 = vunpack.c.l.b16 %v131
    %v249 = vunpack.c.h.b16 %v131
    %v250 = vunpack.c.l.b16 %v132
    %v251 = vunpack.c.h.b16 %v132
    %v252 = vunpack.c.l.b16 %v133
    %v253 = vunpack.c.h.b16 %v133
    %v254 = vunpack.c.l.b16 %v134
    %v255 = vunpack.c.h.b16 %v134
    %v256 = vunpack.c.l.b16 %v135
    %v257 = vunpack.c.h.b16 %v135
    %v258 = vunpack.c.l.b16 %v136
    %v259 = vunpack.c.h.b16 %v136
    %v260 = vunpack.c.l.b16 %v137
    %v261 = vunpack.c.h.b16 %v137
    %v262 = vunpack.c.l.b16 %v138
    %v263 = vunpack.c.h.b16 %v138
    %v264 = vunpack.c.l.b16 %v139
    %v265 = vunpack.c.h.b16 %v139
    %v266 = vunpack.c.l.b16 %v140
    %v267 = vunpack.c.h.b16 %v140
    %v268 = vunpack.c.l.b16 %v141
    %v269 = vunpack.c.h.b16 %v141
    %v270 = vpack.c.b16 %v208, %v206
    %v271 = vpack.c.b16 %v209, %v207
    %v272 = vpack.c.b16 %v212, %v210
    %v273 = vpack.c.b16 %v213, %v211
    %v274 = vpack.c.b16 %v216, %v214
    %v275 = vpack.c.b16 %v217, %v215
    %v276 = vpack.c.b16 %v220, %v218
    %v277 = vpack.c.b16 %v221, %v219
    %v278 = vpack.c.b16 %v224, %v222
    %v279 = vpack.c.b16 %v225, %v223
    %v280 = vpack.c.b16 %v228, %v226
    %v281 = vpack.c.b16 %v229, %v227
    %v282 = vpack.c.b16 %v232, %v230
    %v283 = vpack.c.b16 %v233, %v231
    %v284 = vpack.c.b16 %v236, %v234
    %v285 = vpack.c.b16 %v237, %v235
    %v286 = vpack.c.b16 %v240, %v238
    %v287 = vpack.c.b16 %v241, %v239
    %v288 = vpack.c.b16 %v244, %v242
    %v289 = vpack.c.b16 %v245, %v243
    %v290 = vpack.c.b16 %v248, %v246
    %v291 = vpack.c.b16 %v249, %v247
    %v292 = vpack.c.b16 %v252, %v250
    %v293 = vpack.c.b16 %v253, %v251
    %v294 = vpack.c.b16 %v256, %v254
    %v295 = vpack.c.b16 %v257, %v255
    %v296 = vpack.c.b16 %v260, %v258
    %v297 = vpack.c.b16 %v261, %v259
    %v298 = vpack.c.b16 %v264, %v262
    %v299 = vpack.c.b16 %v265, %v263
    %v300 = vpack.c.b16 %v268, %v266
    %v301 = vpack.c.b16 %v269, %v267
    %v366 = vunpack.c.l.b16 %v142
    %v367 = vunpack.c.l.b16 %v143
    %v368 = vunpack.c.l.b16 %v144
    %v369 = vunpack.c.l.b16 %v145
    %v370 = vunpack.c.l.b16 %v146
    %v371 = vunpack.c.l.b16 %v147
    %v372 = vunpack.c.l.b16 %v148
    %v373 = vunpack.c.l.b16 %v149
    %v374 = vunpack.c.l.b16 %v150
    %v375 = vunpack.c.l.b16 %v151
    %v376 = vunpack.c.l.b16 %v152
    %v377 = vunpack.c.l.b16 %v153
    %v378 = vunpack.c.l.b16 %v154
    %v379 = vunpack.c.l.b16 %v155
    %v380 = vunpack.c.l.b16 %v156
    %v381 = vunpack.c.l.b16 %v157
    %v382 = vunpack.c.l.b16 %v158
    %v383 = vunpack.c.l.b16 %v159
    %v384 = vunpack.c.l.b16 %v160
    %v385 = vunpack.c.l.b16 %v161
    %v386 = vunpack.c.l.b16 %v162
    %v387 = vunpack.c.l.b16 %v163
    %v388 = vunpack.c.l.b16 %v164
    %v389 = vunpack.c.l.b16 %v165
    %v390 = vunpack.c.l.b16 %v166
    %v391 = vunpack.c.l.b16 %v167
    %v392 = vunpack.c.l.b16 %v168
    %v393 = vunpack.c.l.b16 %v169
    %v394 = vunpack.c.l.b16 %v170
    %v395 = vunpack.c.l.b16 %v171
    %v396 = vunpack.c.l.b16 %v172
    %v397 = vunpack.c.l.b16 %v173
    %v398 = vpack.c.b16 %v367, %v366
    %v399 = vpack.c.b16 %v369, %v368
    %v400 = vpack.c.b16 %v371, %v370
    %v401 = vpack.c.b16 %v373, %v372
    %v402 = vpack.c.b16 %v375, %v374
    %v403 = vpack.c.b16 %v377, %v376
    %v404 = vpack.c.b16 %v379, %v378
    %v405 = vpack.c.b16 %v381, %v380
    %v406 = vpack.c.b16 %v383, %v382
    %v407 = vpack.c.b16 %v385, %v384
    %v408 = vpack.c.b16 %v387, %v386
    %v409 = vpack.c.b16 %v389, %v388
    %v410 = vpack.c.b16 %v391, %v390
    %v411 = vpack.c.b16 %v393, %v392
    %v412 = vpack.c.b16 %v395, %v394
    %v413 = vpack.c.b16 %v397, %v396
    %430 = vmatprep.subr.bf16.mxu0 0
    %431 = vmatpush1.bf16.msra.mxu0 %v398
    %432 = vmatprep.subr.bf16.mxu0 0
    %433 = vmatpush1.bf16.msra.mxu0 %v399
    %434 = vmatprep.subr.bf16.mxu0 0
    %435 = vmatpush1.bf16.msra.mxu0 %v400
    %436 = vmatprep.subr.bf16.mxu0 0
    %437 = vmatpush1.bf16.msra.mxu0 %v401
    %438 = vmatprep.subr.bf16.mxu0 0
    %439 = vmatpush1.bf16.msra.mxu0 %v402
    %440 = vmatprep.subr.bf16.mxu0 0
    %441 = vmatpush1.bf16.msra.mxu0 %v403
    %442 = vmatprep.subr.bf16.mxu0 0
    %443 = vmatpush1.bf16.msra.mxu0 %v404
    %444 = vmatprep.subr.bf16.mxu0 0
    %445 = vmatpush1.bf16.msra.mxu0 %v405
    %446 = vmatprep.subr.bf16.mxu0 0
    %447 = vmatpush1.bf16.msra.mxu0 %v406
    %448 = vmatprep.subr.bf16.mxu0 0
    %449 = vmatpush1.bf16.msra.mxu0 %v407
    %450 = vmatprep.subr.bf16.mxu0 0
    %451 = vmatpush1.bf16.msra.mxu0 %v408
    %452 = vmatprep.subr.bf16.mxu0 0
    %453 = vmatpush1.bf16.msra.mxu0 %v409
    %454 = vmatprep.subr.bf16.mxu0 0
    %455 = vmatpush1.bf16.msra.mxu0 %v410
    %456 = vmatprep.subr.bf16.mxu0 0
    %457 = vmatpush1.bf16.msra.mxu0 %v411
    %458 = vmatprep.subr.bf16.mxu0 0
    %459 = vmatpush1.bf16.msra.mxu0 %v412
    %460 = vmatprep.subr.bf16.mxu0 0
    %461 = vmatpush1.bf16.msra.mxu0 %v413
    %462 = vmatprep.mubr.bf16.mxu0 %v271
    %463 = vmatmul.mubr.bf16.gmra.mrb[0].mxu0 %v270
    %v464 = vpop.f32.mrb[0].mxu0
    %v465 = vadd.f32 0.0, %v464
    %v466 = vpop.f32.mrb[0].mxu0
    %v467 = vpop.f32.mrb[0].mxu0
    %v468 = vadd.f32 0.0, %v467
    %v469 = vpop.f32.mrb[0].mxu0
    %470 = vmatprep.mubr.bf16.mxu0 %v273
    %471 = vmatmul.mubr.bf16.gmra.mrb[0].mxu0 %v272
    %v472 = vpop.f32.mrb[0].mxu0
    %v473 = vadd.f32 0.0, %v472
    %v474 = vpop.f32.mrb[0].mxu0
    %v475 = vpop.f32.mrb[0].mxu0
    %v476 = vadd.f32 0.0, %v475
    %v477 = vpop.f32.mrb[0].mxu0
    %478 = vmatprep.mubr.bf16.mxu0 %v275
    %479 = vmatmul.mubr.bf16.gmra.mrb[0].mxu0 %v274
    %v480 = vpop.f32.mrb[0].mxu0
    %v481 = vadd.f32 0.0, %v480
    %v482 = vpop.f32.mrb[0].mxu0
    %v483 = vpop.f32.mrb[0].mxu0
    %v484 = vadd.f32 0.0, %v483
    %v485 = vpop.f32.mrb[0].mxu0
    %486 = vmatprep.mubr.bf16.mxu0 %v277
    %487 = vmatmul.mubr.bf16.gmra.mrb[0].mxu0 %v276
    %v488 = vpop.f32.mrb[0].mxu0
    %v489 = vadd.f32 0.0, %v488
    %v490 = vpop.f32.mrb[0].mxu0
    %v491 = vpop.f32.mrb[0].mxu0
    %v492 = vadd.f32 0.0, %v491
    %v493 = vpop.f32.mrb[0].mxu0
    %494 = vmatprep.mubr.bf16.mxu0 %v279
    %495 = vmatmul.mubr.bf16.gmra.mrb[0].mxu0 %v278
    %v496 = vpop.f32.mrb[0].mxu0
    %v497 = vadd.f32 0.0, %v496
    %v498 = vpop.f32.mrb[0].mxu0
    %v499 = vpop.f32.mrb[0].mxu0
    %v500 = vadd.f32 0.0, %v499
    %v501 = vpop.f32.mrb[0].mxu0
    %502 = vmatprep.mubr.bf16.mxu0 %v281
    %503 = vmatmul.mubr.bf16.gmra.mrb[0].mxu0 %v280
    %v504 = vpop.f32.mrb[0].mxu0
    %v505 = vadd.f32 0.0, %v504
    %v506 = vpop.f32.mrb[0].mxu0
    %v507 = vpop.f32.mrb[0].mxu0
    %v508 = vadd.f32 0.0, %v507
    %v509 = vpop.f32.mrb[0].mxu0
    %510 = vmatprep.mubr.bf16.mxu0 %v283
    %511 = vmatmul.mubr.bf16.gmra.mrb[0].mxu0 %v282
    %v512 = vpop.f32.mrb[0].mxu0
    %v513 = vadd.f32 0.0, %v512
    %v514 = vpop.f32.mrb[0].mxu0
    %v515 = vpop.f32.mrb[0].mxu0
    %v516 = vadd.f32 0.0, %v515
    %v517 = vpop.f32.mrb[0].mxu0
    %518 = vmatprep.mubr.bf16.mxu0 %v285
    %519 = vmatmul.mubr.bf16.gmra.mrb[0].mxu0 %v284
    %v520 = vpop.f32.mrb[0].mxu0
    %v521 = vadd.f32 0.0, %v520
    %v522 = vpop.f32.mrb[0].mxu0
    %v523 = vpop.f32.mrb[0].mxu0
    %v524 = vadd.f32 0.0, %v523
    %v525 = vpop.f32.mrb[0].mxu0
    %526 = vmatprep.mubr.bf16.mxu0 %v287
    %527 = vmatmul.mubr.bf16.gmra.mrb[0].mxu0 %v286
    %v528 = vpop.f32.mrb[0].mxu0
    %v529 = vadd.f32 0.0, %v528
    %v530 = vpop.f32.mrb[0].mxu0
    %v531 = vpop.f32.mrb[0].mxu0
    %v532 = vadd.f32 0.0, %v531
    %v533 = vpop.f32.mrb[0].mxu0
    %534 = vmatprep.mubr.bf16.mxu0 %v289
    %535 = vmatmul.mubr.bf16.gmra.mrb[0].mxu0 %v288
    %v536 = vpop.f32.mrb[0].mxu0
    %v537 = vadd.f32 0.0, %v536
    %v538 = vpop.f32.mrb[0].mxu0
    %v539 = vpop.f32.mrb[0].mxu0
    %v540 = vadd.f32 0.0, %v539
    %v541 = vpop.f32.mrb[0].mxu0
    %542 = vmatprep.mubr.bf16.mxu0 %v291
    %543 = vmatmul.mubr.bf16.gmra.mrb[0].mxu0 %v290
    %v544 = vpop.f32.mrb[0].mxu0
    %v545 = vadd.f32 0.0, %v544
    %v546 = vpop.f32.mrb[0].mxu0
    %v547 = vpop.f32.mrb[0].mxu0
    %v548 = vadd.f32 0.0, %v547
    %v549 = vpop.f32.mrb[0].mxu0
    %550 = vmatprep.mubr.bf16.mxu0 %v293
    %551 = vmatmul.mubr.bf16.gmra.mrb[0].mxu0 %v292
    %v552 = vpop.f32.mrb[0].mxu0
    %v553 = vadd.f32 0.0, %v552
    %v554 = vpop.f32.mrb[0].mxu0
    %v555 = vpop.f32.mrb[0].mxu0
    %v556 = vadd.f32 0.0, %v555
    %v557 = vpop.f32.mrb[0].mxu0
    %558 = vmatprep.mubr.bf16.mxu0 %v295
    %559 = vmatmul.mubr.bf16.gmra.mrb[0].mxu0 %v294
    %v560 = vpop.f32.mrb[0].mxu0
    %v561 = vadd.f32 0.0, %v560
    %v562 = vpop.f32.mrb[0].mxu0
    %v563 = vpop.f32.mrb[0].mxu0
    %v564 = vadd.f32 0.0, %v563
    %v565 = vpop.f32.mrb[0].mxu0
    %566 = vmatprep.mubr.bf16.mxu0 %v297
    %567 = vmatmul.mubr.bf16.gmra.mrb[0].mxu0 %v296
    %v568 = vpop.f32.mrb[0].mxu0
    %v569 = vadd.f32 0.0, %v568
    %v570 = vpop.f32.mrb[0].mxu0
    %v571 = vpop.f32.mrb[0].mxu0
    %v572 = vadd.f32 0.0, %v571
    %v573 = vpop.f32.mrb[0].mxu0
    %574 = vmatprep.mubr.bf16.mxu0 %v299
    %575 = vmatmul.mubr.bf16.gmra.mrb[0].mxu0 %v298
    %v576 = vpop.f32.mrb[0].mxu0
    %v577 = vadd.f32 0.0, %v576
    %v578 = vpop.f32.mrb[0].mxu0
    %v579 = vpop.f32.mrb[0].mxu0
    %v580 = vadd.f32 0.0, %v579
    %v581 = vpop.f32.mrb[0].mxu0
    %582 = vmatprep.mubr.bf16.mxu0 %v301
    %583 = vmatmul.mubr.bf16.gmra.mrb[0].mxu0 %v300
    %v584 = vpop.f32.mrb[0].mxu0
    %v585 = vadd.f32 0.0, %v584
    %v586 = vpop.f32.mrb[0].mxu0
    %v587 = vpop.f32.mrb[0].mxu0
    %v588 = vadd.f32 0.0, %v587
    %v589 = vpop.f32.mrb[0].mxu0
    %590 = vdwg.mxu0
    %s591 = smul.u32 0, 256
    %s592 = sshra.s32 %s591, 3
    %s593 = sand.u32 %s591, 7
    %s594 = smul.addr %s592, 4
    %s595 = scalar_lea.vmem [#allocation6], %s594
    %v596 = vld [vmem:[%s595] sm:$0xf]
    %v597 = vld [vmem:[%s595 + $0x4] sm:$0xf]
    %v598 = vld [vmem:[%s595 + $0x8] sm:$0xf]
    %v599 = vld [vmem:[%s595 + $0xc] sm:$0xf]
    %v600 = vld [vmem:[%s595 + $0x10] sm:$0xf]
    %v601 = vld [vmem:[%s595 + $0x14] sm:$0xf]
    %v602 = vld [vmem:[%s595 + $0x18] sm:$0xf]
    %v603 = vld [vmem:[%s595 + $0x1c] sm:$0xf]
    %v604 = vld [vmem:[%s595 + $0x20] sm:$0xf]
    %v605 = vld [vmem:[%s595 + $0x24] sm:$0xf]
    %v606 = vld [vmem:[%s595 + $0x28] sm:$0xf]
    %v607 = vld [vmem:[%s595 + $0x2c] sm:$0xf]
    %v608 = vld [vmem:[%s595 + $0x30] sm:$0xf]
    %v609 = vld [vmem:[%s595 + $0x34] sm:$0xf]
    %v610 = vld [vmem:[%s595 + $0x38] sm:$0xf]
    %v611 = vld [vmem:[%s595 + $0x3c] sm:$0xf]
    %v612 = vld [vmem:[%s595 + $0x40] sm:$0xf]
    %v613 = vld [vmem:[%s595 + $0x44] sm:$0xf]
    %v614 = vld [vmem:[%s595 + $0x48] sm:$0xf]
    %v615 = vld [vmem:[%s595 + $0x4c] sm:$0xf]
    %v616 = vld [vmem:[%s595 + $0x50] sm:$0xf]
    %v617 = vld [vmem:[%s595 + $0x54] sm:$0xf]
    %v618 = vld [vmem:[%s595 + $0x58] sm:$0xf]
    %v619 = vld [vmem:[%s595 + $0x5c] sm:$0xf]
    %v620 = vld [vmem:[%s595 + $0x60] sm:$0xf]
    %v621 = vld [vmem:[%s595 + $0x64] sm:$0xf]
    %v622 = vld [vmem:[%s595 + $0x68] sm:$0xf]
    %v623 = vld [vmem:[%s595 + $0x6c] sm:$0xf]
    %v624 = vld [vmem:[%s595 + $0x70] sm:$0xf]
    %v625 = vld [vmem:[%s595 + $0x74] sm:$0xf]
    %v626 = vld [vmem:[%s595 + $0x78] sm:$0xf]
    %v627 = vld [vmem:[%s595 + $0x7c] sm:$0xf]
    %v628 = vpack.c.bf16 %v468, %v465
    %v629 = vpack.c.bf16 %v476, %v473
    %v630 = vpack.c.bf16 %v484, %v481
    %v631 = vpack.c.bf16 %v492, %v489
    %v632 = vpack.c.bf16 %v500, %v497
    %v633 = vpack.c.bf16 %v508, %v505
    %v634 = vpack.c.bf16 %v516, %v513
    %v635 = vpack.c.bf16 %v524, %v521
    %v636 = vpack.c.bf16 %v532, %v529
    %v637 = vpack.c.bf16 %v540, %v537
    %v638 = vpack.c.bf16 %v548, %v545
    %v639 = vpack.c.bf16 %v556, %v553
    %v640 = vpack.c.bf16 %v564, %v561
    %v641 = vpack.c.bf16 %v572, %v569
    %v642 = vpack.c.bf16 %v580, %v577
    %v643 = vpack.c.bf16 %v588, %v585
    %v676 = vunpack.c.l.b16 %v596
    %v677 = vunpack.c.l.b16 %v597
    %v678 = vunpack.c.l.b16 %v598
    %v679 = vunpack.c.l.b16 %v599
    %v680 = vunpack.c.l.b16 %v600
    %v681 = vunpack.c.l.b16 %v601
    %v682 = vunpack.c.l.b16 %v602
    %v683 = vunpack.c.l.b16 %v603
    %v684 = vunpack.c.l.b16 %v604
    %v685 = vunpack.c.l.b16 %v605
    %v686 = vunpack.c.l.b16 %v606
    %v687 = vunpack.c.l.b16 %v607
    %v688 = vunpack.c.l.b16 %v608
    %v689 = vunpack.c.l.b16 %v609
    %v690 = vunpack.c.l.b16 %v610
    %v691 = vunpack.c.l.b16 %v611
    %v692 = vunpack.c.l.b16 %v612
    %v693 = vunpack.c.l.b16 %v613
    %v694 = vunpack.c.l.b16 %v614
    %v695 = vunpack.c.l.b16 %v615
    %v696 = vunpack.c.l.b16 %v616
    %v697 = vunpack.c.l.b16 %v617
    %v698 = vunpack.c.l.b16 %v618
    %v699 = vunpack.c.l.b16 %v619
    %v700 = vunpack.c.l.b16 %v620
    %v701 = vunpack.c.l.b16 %v621
    %v702 = vunpack.c.l.b16 %v622
    %v703 = vunpack.c.l.b16 %v623
    %v704 = vunpack.c.l.b16 %v624
    %v705 = vunpack.c.l.b16 %v625
    %v706 = vunpack.c.l.b16 %v626
    %v707 = vunpack.c.l.b16 %v627
    %v708 = vpack.c.b16 %v677, %v676
    %v709 = vpack.c.b16 %v679, %v678
    %v710 = vpack.c.b16 %v681, %v680
    %v711 = vpack.c.b16 %v683, %v682
    %v712 = vpack.c.b16 %v685, %v684
    %v713 = vpack.c.b16 %v687, %v686
    %v714 = vpack.c.b16 %v689, %v688
    %v715 = vpack.c.b16 %v691, %v690
    %v716 = vpack.c.b16 %v693, %v692
    %v717 = vpack.c.b16 %v695, %v694
    %v718 = vpack.c.b16 %v697, %v696
    %v719 = vpack.c.b16 %v699, %v698
    %v720 = vpack.c.b16 %v701, %v700
    %v721 = vpack.c.b16 %v703, %v702
    %v722 = vpack.c.b16 %v705, %v704
    %v723 = vpack.c.b16 %v707, %v706
    %v740 = vld [vmem:[#allocation8] sm:$0xf]
    %v741 = vld [vmem:[#allocation8 + $0x4] sm:$0xf]
    %v742 = vld [vmem:[#allocation8 + $0x8] sm:$0xf]
    %v743 = vld [vmem:[#allocation8 + $0xc] sm:$0xf]
    %v744 = vld [vmem:[#allocation8 + $0x10] sm:$0xf]
    %v745 = vld [vmem:[#allocation8 + $0x14] sm:$0xf]
    %v746 = vld [vmem:[#allocation8 + $0x18] sm:$0xf]
    %v747 = vld [vmem:[#allocation8 + $0x1c] sm:$0xf]
    %v748 = vld [vmem:[#allocation8 + $0x20] sm:$0xf]
    %v749 = vld [vmem:[#allocation8 + $0x24] sm:$0xf]
    %v750 = vld [vmem:[#allocation8 + $0x28] sm:$0xf]
    %v751 = vld [vmem:[#allocation8 + $0x2c] sm:$0xf]
    %v752 = vld [vmem:[#allocation8 + $0x30] sm:$0xf]
    %v753 = vld [vmem:[#allocation8 + $0x34] sm:$0xf]
    %v754 = vld [vmem:[#allocation8 + $0x38] sm:$0xf]
    %v755 = vld [vmem:[#allocation8 + $0x3c] sm:$0xf]
    %v756 = vld [vmem:[#allocation8 + $0x40] sm:$0xf]
    %v757 = vld [vmem:[#allocation8 + $0x44] sm:$0xf]
    %v758 = vld [vmem:[#allocation8 + $0x48] sm:$0xf]
    %v759 = vld [vmem:[#allocation8 + $0x4c] sm:$0xf]
    %v760 = vld [vmem:[#allocation8 + $0x50] sm:$0xf]
    %v761 = vld [vmem:[#allocation8 + $0x54] sm:$0xf]
    %v762 = vld [vmem:[#allocation8 + $0x58] sm:$0xf]
    %v763 = vld [vmem:[#allocation8 + $0x5c] sm:$0xf]
    %v764 = vld [vmem:[#allocation8 + $0x60] sm:$0xf]
    %v765 = vld [vmem:[#allocation8 + $0x64] sm:$0xf]
    %v766 = vld [vmem:[#allocation8 + $0x68] sm:$0xf]
    %v767 = vld [vmem:[#allocation8 + $0x6c] sm:$0xf]
    %v768 = vld [vmem:[#allocation8 + $0x70] sm:$0xf]
    %v769 = vld [vmem:[#allocation8 + $0x74] sm:$0xf]
    %v770 = vld [vmem:[#allocation8 + $0x78] sm:$0xf]
    %v771 = vld [vmem:[#allocation8 + $0x7c] sm:$0xf]
    %v772 = vld [vmem:[%s3] sm:$0x1]
    %v774 = vlaneseq
    %v775 = vshrl.u32 %v774, 7
    %v776 = vsub.s32 0, %v775
    %v777 = vrot.slane %v772, %v776
    %v811 = vunpack.c.l.b16 %v740
    %v812 = vunpack.c.l.b16 %v741
    %v813 = vunpack.c.l.b16 %v742
    %v814 = vunpack.c.l.b16 %v743
    %v815 = vunpack.c.l.b16 %v744
    %v816 = vunpack.c.l.b16 %v745
    %v817 = vunpack.c.l.b16 %v746
    %v818 = vunpack.c.l.b16 %v747
    %v819 = vunpack.c.l.b16 %v748
    %v820 = vunpack.c.l.b16 %v749
    %v821 = vunpack.c.l.b16 %v750
    %v822 = vunpack.c.l.b16 %v751
    %v823 = vunpack.c.l.b16 %v752
    %v824 = vunpack.c.l.b16 %v753
    %v825 = vunpack.c.l.b16 %v754
    %v826 = vunpack.c.l.b16 %v755
    %v827 = vunpack.c.l.b16 %v756
    %v828 = vunpack.c.l.b16 %v757
    %v829 = vunpack.c.l.b16 %v758
    %v830 = vunpack.c.l.b16 %v759
    %v831 = vunpack.c.l.b16 %v760
    %v832 = vunpack.c.l.b16 %v761
    %v833 = vunpack.c.l.b16 %v762
    %v834 = vunpack.c.l.b16 %v763
    %v835 = vunpack.c.l.b16 %v764
    %v836 = vunpack.c.l.b16 %v765
    %v837 = vunpack.c.l.b16 %v766
    %v838 = vunpack.c.l.b16 %v767
    %v839 = vunpack.c.l.b16 %v768
    %v840 = vunpack.c.l.b16 %v769
    %v841 = vunpack.c.l.b16 %v770
    %v842 = vunpack.c.l.b16 %v771
    %v843 = vpack.c.b16 %v812, %v811
    %v844 = vpack.c.b16 %v814, %v813
    %v845 = vpack.c.b16 %v816, %v815
    %v846 = vpack.c.b16 %v818, %v817
    %v847 = vpack.c.b16 %v820, %v819
    %v848 = vpack.c.b16 %v822, %v821
    %v849 = vpack.c.b16 %v824, %v823
    %v850 = vpack.c.b16 %v826, %v825
    %v851 = vpack.c.b16 %v828, %v827
    %v852 = vpack.c.b16 %v830, %v829
    %v853 = vpack.c.b16 %v832, %v831
    %v854 = vpack.c.b16 %v834, %v833
    %v855 = vpack.c.b16 %v836, %v835
    %v856 = vpack.c.b16 %v838, %v837
    %v857 = vpack.c.b16 %v840, %v839
    %v858 = vpack.c.b16 %v842, %v841
    %875 = vmatprep.subr.bf16.mxu0 0
    %876 = vmatpush1.bf16.msra.mxu0 %v843
    %877 = vmatprep.subr.bf16.mxu0 0
    %878 = vmatpush1.bf16.msra.mxu0 %v844
    %879 = vmatprep.subr.bf16.mxu0 0
    %880 = vmatpush1.bf16.msra.mxu0 %v845
    %881 = vmatprep.subr.bf16.mxu0 0
    %882 = vmatpush1.bf16.msra.mxu0 %v846
    %883 = vmatprep.subr.bf16.mxu0 0
    %884 = vmatpush1.bf16.msra.mxu0 %v847
    %885 = vmatprep.subr.bf16.mxu0 0
    %886 = vmatpush1.bf16.msra.mxu0 %v848
    %887 = vmatprep.subr.bf16.mxu0 0
    %888 = vmatpush1.bf16.msra.mxu0 %v849
    %889 = vmatprep.subr.bf16.mxu0 0
    %890 = vmatpush1.bf16.msra.mxu0 %v850
    %891 = vmatprep.subr.bf16.mxu0 0
    %892 = vmatpush1.bf16.msra.mxu0 %v851
    %893 = vmatprep.subr.bf16.mxu0 0
    %894 = vmatpush1.bf16.msra.mxu0 %v852
    %895 = vmatprep.subr.bf16.mxu0 0
    %896 = vmatpush1.bf16.msra.mxu0 %v853
    %897 = vmatprep.subr.bf16.mxu0 0
    %898 = vmatpush1.bf16.msra.mxu0 %v854
    %899 = vmatprep.subr.bf16.mxu0 0
    %900 = vmatpush1.bf16.msra.mxu0 %v855
    %901 = vmatprep.subr.bf16.mxu0 0
    %902 = vmatpush1.bf16.msra.mxu0 %v856
    %903 = vmatprep.subr.bf16.mxu0 0
    %904 = vmatpush1.bf16.msra.mxu0 %v857
    %905 = vmatprep.subr.bf16.mxu0 0
    %906 = vmatpush1.bf16.msra.mxu0 %v858
    %907 = vmatprep.mubr.bf16.mxu0 %v708
    %908 = vmatmul.mubr.bf16.gmra.mrb[0].mxu0 %v628
    %v909 = vpop.f32.mrb[0].mxu0
    %v910 = vadd.f32 %v777, %v909
    %v911 = vpop.f32.mrb[0].mxu0
    %v912 = vpop.f32.mrb[0].mxu0
    %v913 = vadd.f32 %v777, %v912
    %v914 = vpop.f32.mrb[0].mxu0
    %915 = vmatprep.mubr.bf16.mxu0 %v709
    %916 = vmatmul.mubr.bf16.gmra.mrb[0].mxu0 %v629
    %v917 = vpop.f32.mrb[0].mxu0
    %v918 = vadd.f32 %v777, %v917
    %v919 = vpop.f32.mrb[0].mxu0
    %v920 = vpop.f32.mrb[0].mxu0
    %v921 = vadd.f32 %v777, %v920
    %v922 = vpop.f32.mrb[0].mxu0
    %923 = vmatprep.mubr.bf16.mxu0 %v710
    %924 = vmatmul.mubr.bf16.gmra.mrb[0].mxu0 %v630
    %v925 = vpop.f32.mrb[0].mxu0
    %v926 = vadd.f32 %v777, %v925
    %v927 = vpop.f32.mrb[0].mxu0
    %v928 = vpop.f32.mrb[0].mxu0
    %v929 = vadd.f32 %v777, %v928
    %v930 = vpop.f32.mrb[0].mxu0
    %931 = vmatprep.mubr.bf16.mxu0 %v711
    %932 = vmatmul.mubr.bf16.gmra.mrb[0].mxu0 %v631
    %v933 = vpop.f32.mrb[0].mxu0
    %v934 = vadd.f32 %v777, %v933
    %v935 = vpop.f32.mrb[0].mxu0
    %v936 = vpop.f32.mrb[0].mxu0
    %v937 = vadd.f32 %v777, %v936
    %v938 = vpop.f32.mrb[0].mxu0
    %939 = vmatprep.mubr.bf16.mxu0 %v712
    %940 = vmatmul.mubr.bf16.gmra.mrb[0].mxu0 %v632
    %v941 = vpop.f32.mrb[0].mxu0
    %v942 = vadd.f32 %v777, %v941
    %v943 = vpop.f32.mrb[0].mxu0
    %v944 = vpop.f32.mrb[0].mxu0
    %v945 = vadd.f32 %v777, %v944
    %v946 = vpop.f32.mrb[0].mxu0
    %947 = vmatprep.mubr.bf16.mxu0 %v713
    %948 = vmatmul.mubr.bf16.gmra.mrb[0].mxu0 %v633
    %v949 = vpop.f32.mrb[0].mxu0
    %v950 = vadd.f32 %v777, %v949
    %v951 = vpop.f32.mrb[0].mxu0
    %v952 = vpop.f32.mrb[0].mxu0
    %v953 = vadd.f32 %v777, %v952
    %v954 = vpop.f32.mrb[0].mxu0
    %955 = vmatprep.mubr.bf16.mxu0 %v714
    %956 = vmatmul.mubr.bf16.gmra.mrb[0].mxu0 %v634
    %v957 = vpop.f32.mrb[0].mxu0
    %v958 = vadd.f32 %v777, %v957
    %v959 = vpop.f32.mrb[0].mxu0
    %v960 = vpop.f32.mrb[0].mxu0
    %v961 = vadd.f32 %v777, %v960
    %v962 = vpop.f32.mrb[0].mxu0
    %963 = vmatprep.mubr.bf16.mxu0 %v715
    %964 = vmatmul.mubr.bf16.gmra.mrb[0].mxu0 %v635
    %v965 = vpop.f32.mrb[0].mxu0
    %v966 = vadd.f32 %v777, %v965
    %v967 = vpop.f32.mrb[0].mxu0
    %v968 = vpop.f32.mrb[0].mxu0
    %v969 = vadd.f32 %v777, %v968
    %v970 = vpop.f32.mrb[0].mxu0
    %971 = vmatprep.mubr.bf16.mxu0 %v716
    %972 = vmatmul.mubr.bf16.gmra.mrb[0].mxu0 %v636
    %v973 = vpop.f32.mrb[0].mxu0
    %v974 = vadd.f32 %v777, %v973
    %v975 = vpop.f32.mrb[0].mxu0
    %v976 = vpop.f32.mrb[0].mxu0
    %v977 = vadd.f32 %v777, %v976
    %v978 = vpop.f32.mrb[0].mxu0
    %979 = vmatprep.mubr.bf16.mxu0 %v717
    %980 = vmatmul.mubr.bf16.gmra.mrb[0].mxu0 %v637
    %v981 = vpop.f32.mrb[0].mxu0
    %v982 = vadd.f32 %v777, %v981
    %v983 = vpop.f32.mrb[0].mxu0
    %v984 = vpop.f32.mrb[0].mxu0
    %v985 = vadd.f32 %v777, %v984
    %v986 = vpop.f32.mrb[0].mxu0
    %987 = vmatprep.mubr.bf16.mxu0 %v718
    %988 = vmatmul.mubr.bf16.gmra.mrb[0].mxu0 %v638
    %v989 = vpop.f32.mrb[0].mxu0
    %v990 = vadd.f32 %v777, %v989
    %v991 = vpop.f32.mrb[0].mxu0
    %v992 = vpop.f32.mrb[0].mxu0
    %v993 = vadd.f32 %v777, %v992
    %v994 = vpop.f32.mrb[0].mxu0
    %995 = vmatprep.mubr.bf16.mxu0 %v719
    %996 = vmatmul.mubr.bf16.gmra.mrb[0].mxu0 %v639
    %v997 = vpop.f32.mrb[0].mxu0
    %v998 = vadd.f32 %v777, %v997
    %v999 = vpop.f32.mrb[0].mxu0
    %v1000 = vpop.f32.mrb[0].mxu0
    %v1001 = vadd.f32 %v777, %v1000
    %v1002 = vpop.f32.mrb[0].mxu0
    %1003 = vmatprep.mubr.bf16.mxu0 %v720
    %1004 = vmatmul.mubr.bf16.gmra.mrb[0].mxu0 %v640
    %v1005 = vpop.f32.mrb[0].mxu0
    %v1006 = vadd.f32 %v777, %v1005
    %v1007 = vpop.f32.mrb[0].mxu0
    %v1008 = vpop.f32.mrb[0].mxu0
    %v1009 = vadd.f32 %v777, %v1008
    %v1010 = vpop.f32.mrb[0].mxu0
    %1011 = vmatprep.mubr.bf16.mxu0 %v721
    %1012 = vmatmul.mubr.bf16.gmra.mrb[0].mxu0 %v641
    %v1013 = vpop.f32.mrb[0].mxu0
    %v1014 = vadd.f32 %v777, %v1013
    %v1015 = vpop.f32.mrb[0].mxu0
    %v1016 = vpop.f32.mrb[0].mxu0
    %v1017 = vadd.f32 %v777, %v1016
    %v1018 = vpop.f32.mrb[0].mxu0
    %1019 = vmatprep.mubr.bf16.mxu0 %v722
    %1020 = vmatmul.mubr.bf16.gmra.mrb[0].mxu0 %v642
    %v1021 = vpop.f32.mrb[0].mxu0
    %v1022 = vadd.f32 %v777, %v1021
    %v1023 = vpop.f32.mrb[0].mxu0
    %v1024 = vpop.f32.mrb[0].mxu0
    %v1025 = vadd.f32 %v777, %v1024
    %v1026 = vpop.f32.mrb[0].mxu0
    %1027 = vmatprep.mubr.bf16.mxu0 %v723
    %1028 = vmatmul.mubr.bf16.gmra.mrb[0].mxu0 %v643
    %v1029 = vpop.f32.mrb[0].mxu0
    %v1030 = vadd.f32 %v777, %v1029
    %v1031 = vpop.f32.mrb[0].mxu0
    %v1032 = vpop.f32.mrb[0].mxu0
    %v1033 = vadd.f32 %v777, %v1032
    %v1034 = vpop.f32.mrb[0].mxu0
    %1035 = vdwg.mxu0
    %v1036 = vmax.f32 %v910, 0.0
    %v1037 = vmax.f32 %v913, 0.0
    %v1038 = vmax.f32 %v918, 0.0
    %v1039 = vmax.f32 %v921, 0.0
    %v1040 = vmax.f32 %v926, 0.0
    %v1041 = vmax.f32 %v929, 0.0
    %v1042 = vmax.f32 %v934, 0.0
    %v1043 = vmax.f32 %v937, 0.0
    %v1044 = vmax.f32 %v942, 0.0
    %v1045 = vmax.f32 %v945, 0.0
    %v1046 = vmax.f32 %v950, 0.0
    %v1047 = vmax.f32 %v953, 0.0
    %v1048 = vmax.f32 %v958, 0.0
    %v1049 = vmax.f32 %v961, 0.0
    %v1050 = vmax.f32 %v966, 0.0
    %v1051 = vmax.f32 %v969, 0.0
    %v1052 = vmax.f32 %v974, 0.0
    %v1053 = vmax.f32 %v977, 0.0
    %v1054 = vmax.f32 %v982, 0.0
    %v1055 = vmax.f32 %v985, 0.0
    %v1056 = vmax.f32 %v990, 0.0
    %v1057 = vmax.f32 %v993, 0.0
    %v1058 = vmax.f32 %v998, 0.0
    %v1059 = vmax.f32 %v1001, 0.0
    %v1060 = vmax.f32 %v1006, 0.0
    %v1061 = vmax.f32 %v1009, 0.0
    %v1062 = vmax.f32 %v1014, 0.0
    %v1063 = vmax.f32 %v1017, 0.0
    %v1064 = vmax.f32 %v1022, 0.0
    %v1065 = vmax.f32 %v1025, 0.0
    %v1066 = vmax.f32 %v1030, 0.0
    %v1067 = vmax.f32 %v1033, 0.0
    %v1068 = vpack.c.bf16 %v1037, %v1036
    %v1069 = vpack.c.bf16 %v1039, %v1038
    %v1070 = vpack.c.bf16 %v1041, %v1040
    %v1071 = vpack.c.bf16 %v1043, %v1042
    %v1072 = vpack.c.bf16 %v1045, %v1044
    %v1073 = vpack.c.bf16 %v1047, %v1046
    %v1074 = vpack.c.bf16 %v1049, %v1048
    %v1075 = vpack.c.bf16 %v1051, %v1050
    %v1076 = vpack.c.bf16 %v1053, %v1052
    %v1077 = vpack.c.bf16 %v1055, %v1054
    %v1078 = vpack.c.bf16 %v1057, %v1056
    %v1079 = vpack.c.bf16 %v1059, %v1058
    %v1080 = vpack.c.bf16 %v1061, %v1060
    %v1081 = vpack.c.bf16 %v1063, %v1062
    %v1082 = vpack.c.bf16 %v1065, %v1064
    %v1083 = vpack.c.bf16 %v1067, %v1066
    %v1084 = vld [vmem:[#allocation2] sm:$0xff]
    %v1085 = vld [vmem:[%s4] sm:$0xff]
    %v1087 = vunpack.c.l.b16 %v1085
    %v1088 = vunpack.c.h.b16 %v1085
    %v1089 = vpack.c.b16 %v1087, %v1087
    %v1090 = vpack.c.b16 %v1088, %v1088
    %1093 = vmatprep.subr.bf16.mxu0 0
    %1094 = vmatpush1.bf16.msra.mxu0 %v1068
    %1095 = vmatprep.subr.bf16.mxu0 0
    %1096 = vmatpush1.bf16.msra.mxu0 %v1069
    %1097 = vmatprep.subr.bf16.mxu0 0
    %1098 = vmatpush1.bf16.msra.mxu0 %v1070
    %1099 = vmatprep.subr.bf16.mxu0 0
    %1100 = vmatpush1.bf16.msra.mxu0 %v1071
    %1101 = vmatprep.subr.bf16.mxu0 0
    %1102 = vmatpush1.bf16.msra.mxu0 %v1072
    %1103 = vmatprep.subr.bf16.mxu0 0
    %1104 = vmatpush1.bf16.msra.mxu0 %v1073
    %1105 = vmatprep.subr.bf16.mxu0 0
    %1106 = vmatpush1.bf16.msra.mxu0 %v1074
    %1107 = vmatprep.subr.bf16.mxu0 0
    %1108 = vmatpush1.bf16.msra.mxu0 %v1075
    %1109 = vmatprep.subr.bf16.mxu0 0
    %1110 = vmatpush1.bf16.msra.mxu0 %v1076
    %1111 = vmatprep.subr.bf16.mxu0 0
    %1112 = vmatpush1.bf16.msra.mxu0 %v1077
    %1113 = vmatprep.subr.bf16.mxu0 0
    %1114 = vmatpush1.bf16.msra.mxu0 %v1078
    %1115 = vmatprep.subr.bf16.mxu0 0
    %1116 = vmatpush1.bf16.msra.mxu0 %v1079
    %1117 = vmatprep.subr.bf16.mxu0 0
    %1118 = vmatpush1.bf16.msra.mxu0 %v1080
    %1119 = vmatprep.subr.bf16.mxu0 0
    %1120 = vmatpush1.bf16.msra.mxu0 %v1081
    %1121 = vmatprep.subr.bf16.mxu0 0
    %1122 = vmatpush1.bf16.msra.mxu0 %v1082
    %1123 = vmatprep.subr.bf16.mxu0 0
    %1124 = vmatpush1.bf16.msra.mxu0 %v1083
    %1125 = vmatprep.mubr.bf16.mxu0 %v1090
    %1126 = vmatmul.mubr.bf16.gmra.mrb[0].mxu0 %v1089
    %v1127 = vpop.f32.mrb[0].mxu0
    %v1128 = vadd.f32 0.0, %v1127
    %v1129 = vpop.f32.mrb[0].mxu0
    %v1130 = vpop.f32.mrb[0].mxu0
    %v1131 = vpop.f32.mrb[0].mxu0
    %1132 = vdwg.mxu0
    %v1133 = vadd.f32 %v1084, %v1128
    %1134 = vst [vmem:[#allocation2] sm:$0xff] %v1133
    // Predicated region
    $region66: #{tpu_custom_call.1} parent=1 // pred_check
      %p1135 = pneg %p105
    $region67: #{tpu_custom_call.1} parent=1 // pred_check_branch
      %1137 = sbr.rel (%p1135) target = $region69
    $region68: #{tpu_custom_call.1} parent=1 // pred_region
      %v1138 = vld [vmem:[#allocation2] sm:$0xff]
      %v1139 = vld [vmem:[%s5] sm:$0xff]
      %1141 = vset.pattern.permute.xlu0 0
      %1142 = vperm.xlu0 %1141, %v1139
      %v1143 = vpop.permute.xlu0 %1142
      %v1145 = vmul.f32 %v1138, %v1143
      %v1146 = vpack.c.bf16 %v1145, %v1145
      %v1147 = vld [vmem:[#allocation9] sm:$0xf]
      %v1148 = vld [vmem:[#allocation9 + $0x4] sm:$0xf]
      %v1149 = vld [vmem:[#allocation9 + $0x8] sm:$0xf]
      %v1150 = vld [vmem:[#allocation9 + $0xc] sm:$0xf]
      %v1151 = vld [vmem:[#allocation9 + $0x10] sm:$0xf]
      %v1152 = vld [vmem:[#allocation9 + $0x14] sm:$0xf]
      %v1153 = vld [vmem:[#allocation9 + $0x18] sm:$0xf]
      %v1154 = vld [vmem:[#allocation9 + $0x1c] sm:$0xf]
      %v1155 = vld [vmem:[#allocation9 + $0x20] sm:$0xf]
      %v1156 = vld [vmem:[#allocation9 + $0x24] sm:$0xf]
      %v1157 = vld [vmem:[#allocation9 + $0x28] sm:$0xf]
      %v1158 = vld [vmem:[#allocation9 + $0x2c] sm:$0xf]
      %v1159 = vld [vmem:[#allocation9 + $0x30] sm:$0xf]
      %v1160 = vld [vmem:[#allocation9 + $0x34] sm:$0xf]
      %v1161 = vld [vmem:[#allocation9 + $0x38] sm:$0xf]
      %v1162 = vld [vmem:[#allocation9 + $0x3c] sm:$0xf]
      %v1163 = vld [vmem:[%s6] sm:$0xf]
      %v1164 = vld [vmem:[#allocation11] sm:$0xf]
      %v1165 = vld [vmem:[#allocation11 + $0x4] sm:$0xf]
      %v1166 = vld [vmem:[#allocation11 + $0x8] sm:$0xf]
      %v1167 = vld [vmem:[#allocation11 + $0xc] sm:$0xf]
      %v1168 = vld [vmem:[#allocation11 + $0x10] sm:$0xf]
      %v1169 = vld [vmem:[#allocation11 + $0x14] sm:$0xf]
      %v1170 = vld [vmem:[#allocation11 + $0x18] sm:$0xf]
      %v1171 = vld [vmem:[#allocation11 + $0x1c] sm:$0xf]
      %v1172 = vld [vmem:[#allocation11 + $0x20] sm:$0xf]
      %v1173 = vld [vmem:[#allocation11 + $0x24] sm:$0xf]
      %v1174 = vld [vmem:[#allocation11 + $0x28] sm:$0xf]
      %v1175 = vld [vmem:[#allocation11 + $0x2c] sm:$0xf]
      %v1176 = vld [vmem:[#allocation11 + $0x30] sm:$0xf]
      %v1177 = vld [vmem:[#allocation11 + $0x34] sm:$0xf]
      %v1178 = vld [vmem:[#allocation11 + $0x38] sm:$0xf]
      %v1179 = vld [vmem:[#allocation11 + $0x3c] sm:$0xf]
      %v1196 = vunpack.c.l.b16 %v1164
      %v1197 = vunpack.c.l.b16 %v1165
      %v1198 = vunpack.c.l.b16 %v1166
      %v1199 = vunpack.c.l.b16 %v1167
      %v1200 = vunpack.c.l.b16 %v1168
      %v1201 = vunpack.c.l.b16 %v1169
      %v1202 = vunpack.c.l.b16 %v1170
      %v1203 = vunpack.c.l.b16 %v1171
      %v1204 = vunpack.c.l.b16 %v1172
      %v1205 = vunpack.c.l.b16 %v1173
      %v1206 = vunpack.c.l.b16 %v1174
      %v1207 = vunpack.c.l.b16 %v1175
      %v1208 = vunpack.c.l.b16 %v1176
      %v1209 = vunpack.c.l.b16 %v1177
      %v1210 = vunpack.c.l.b16 %v1178
      %v1211 = vunpack.c.l.b16 %v1179
      %v1212 = vpack.c.b16 %v1197, %v1196
      %v1213 = vpack.c.b16 %v1199, %v1198
      %v1214 = vpack.c.b16 %v1201, %v1200
      %v1215 = vpack.c.b16 %v1203, %v1202
      %v1216 = vpack.c.b16 %v1205, %v1204
      %v1217 = vpack.c.b16 %v1207, %v1206
      %v1218 = vpack.c.b16 %v1209, %v1208
      %v1219 = vpack.c.b16 %v1211, %v1210
      %1228 = vmatprep.subr.bf16.mxu0 0
      %1229 = vmatpush1.bf16.msra.mxu0 %v1212
      %1230 = vmatprep.subr.bf16.mxu0 0
      %1231 = vmatpush1.bf16.msra.mxu0 %v1213
      %1232 = vmatprep.subr.bf16.mxu0 0
      %1233 = vmatpush1.bf16.msra.mxu0 %v1214
      %1234 = vmatprep.subr.bf16.mxu0 0
      %1235 = vmatpush1.bf16.msra.mxu0 %v1215
      %1236 = vmatprep.subr.bf16.mxu0 0
      %1237 = vmatpush1.bf16.msra.mxu0 %v1216
      %1238 = vmatprep.subr.bf16.mxu0 0
      %1239 = vmatpush1.bf16.msra.mxu0 %v1217
      %1240 = vmatprep.subr.bf16.mxu0 0
      %1241 = vmatpush1.bf16.msra.mxu0 %v1218
      %1242 = vmatprep.subr.bf16.mxu0 0
      %1243 = vmatpush1.bf16.msra.mxu0 %v1219
      %1244 = vmatprep.subr.bf16.mxu0 0
      %1245 = vmatpush1.bf16.msra.mxu0 0
      %1246 = vmatprep.subr.bf16.mxu0 0
      %1247 = vmatpush1.bf16.msra.mxu0 0
      %1248 = vmatprep.subr.bf16.mxu0 0
      %1249 = vmatpush1.bf16.msra.mxu0 0
      %1250 = vmatprep.subr.bf16.mxu0 0
      %1251 = vmatpush1.bf16.msra.mxu0 0
      %1252 = vmatprep.subr.bf16.mxu0 0
      %1253 = vmatpush1.bf16.msra.mxu0 0
      %1254 = vmatprep.subr.bf16.mxu0 0
      %1255 = vmatpush1.bf16.msra.mxu0 0
      %1256 = vmatprep.subr.bf16.mxu0 0
      %1257 = vmatpush1.bf16.msra.mxu0 0
      %1258 = vmatprep.subr.bf16.mxu0 0
      %1259 = vmatpush1.bf16.msra.mxu0 0
      %1260 = vmatprep.mubr.bf16.mxu0 0
      %1261 = vmatmul.mubr.bf16.gmra.mrb[0].mxu0 %v1163
      %v1262 = vpop.f32.mrb[0].mxu0
      %v1263 = vadd.f32 0.0, %v1262
      %v1264 = vpop.f32.mrb[0].mxu0
      %v1265 = vpop.f32.mrb[0].mxu0
      %v1266 = vpop.f32.mrb[0].mxu0
      %1267 = vdwg.mxu0
      %v1284 = vunpack.c.l.b16 %v1147
      %v1285 = vunpack.c.l.b16 %v1148
      %v1286 = vunpack.c.l.b16 %v1149
      %v1287 = vunpack.c.l.b16 %v1150
      %v1288 = vunpack.c.l.b16 %v1151
      %v1289 = vunpack.c.l.b16 %v1152
      %v1290 = vunpack.c.l.b16 %v1153
      %v1291 = vunpack.c.l.b16 %v1154
      %v1292 = vunpack.c.l.b16 %v1155
      %v1293 = vunpack.c.l.b16 %v1156
      %v1294 = vunpack.c.l.b16 %v1157
      %v1295 = vunpack.c.l.b16 %v1158
      %v1296 = vunpack.c.l.b16 %v1159
      %v1297 = vunpack.c.l.b16 %v1160
      %v1298 = vunpack.c.l.b16 %v1161
      %v1299 = vunpack.c.l.b16 %v1162
      %v1300 = vpack.c.b16 %v1285, %v1284
      %v1301 = vpack.c.b16 %v1287, %v1286
      %v1302 = vpack.c.b16 %v1289, %v1288
      %v1303 = vpack.c.b16 %v1291, %v1290
      %v1304 = vpack.c.b16 %v1293, %v1292
      %v1305 = vpack.c.b16 %v1295, %v1294
      %v1306 = vpack.c.b16 %v1297, %v1296
      %v1307 = vpack.c.b16 %v1299, %v1298
      %1316 = vmatprep.subr.bf16.mxu0 0
      %1317 = vmatpush1.bf16.msra.mxu0 %v1300
      %1318 = vmatprep.subr.bf16.mxu0 0
      %1319 = vmatpush1.bf16.msra.mxu0 %v1301
      %1320 = vmatprep.subr.bf16.mxu0 0
      %1321 = vmatpush1.bf16.msra.mxu0 %v1302
      %1322 = vmatprep.subr.bf16.mxu0 0
      %1323 = vmatpush1.bf16.msra.mxu0 %v1303
      %1324 = vmatprep.subr.bf16.mxu0 0
      %1325 = vmatpush1.bf16.msra.mxu0 %v1304
      %1326 = vmatprep.subr.bf16.mxu0 0
      %1327 = vmatpush1.bf16.msra.mxu0 %v1305
      %1328 = vmatprep.subr.bf16.mxu0 0
      %1329 = vmatpush1.bf16.msra.mxu0 %v1306
      %1330 = vmatprep.subr.bf16.mxu0 0
      %1331 = vmatpush1.bf16.msra.mxu0 %v1307
      %1332 = vmatprep.subr.bf16.mxu0 0
      %1333 = vmatpush1.bf16.msra.mxu0 0
      %1334 = vmatprep.subr.bf16.mxu0 0
      %1335 = vmatpush1.bf16.msra.mxu0 0
      %1336 = vmatprep.subr.bf16.mxu0 0
      %1337 = vmatpush1.bf16.msra.mxu0 0
      %1338 = vmatprep.subr.bf16.mxu0 0
      %1339 = vmatpush1.bf16.msra.mxu0 0
      %1340 = vmatprep.subr.bf16.mxu0 0
      %1341 = vmatpush1.bf16.msra.mxu0 0
      %1342 = vmatprep.subr.bf16.mxu0 0
      %1343 = vmatpush1.bf16.msra.mxu0 0
      %1344 = vmatprep.subr.bf16.mxu0 0
      %1345 = vmatpush1.bf16.msra.mxu0 0
      %1346 = vmatprep.subr.bf16.mxu0 0
      %1347 = vmatpush1.bf16.msra.mxu0 0
      %1348 = vmatprep.mubr.bf16.mxu0 0
      %1349 = vmatmul.mubr.bf16.gmra.mrb[0].mxu0 %v1146
      %v1350 = vpop.f32.mrb[0].mxu0
      %v1351 = vadd.f32 %v1263, %v1350
      %v1352 = vpop.f32.mrb[0].mxu0
      %v1353 = vpop.f32.mrb[0].mxu0
      %v1354 = vpop.f32.mrb[0].mxu0
      %1355 = vdwg.mxu0
      %v1356 = vld [vmem:[%s9] sm:$0x1]
      %v1358 = vlaneseq
      %v1359 = vshrl.u32 %v1358, 7
      %v1360 = vsub.s32 0, %v1359
      %v1361 = vrot.slane %v1356, %v1360
      %v1363 = vadd.f32 %v1351, %v1361
      %1364 = vst [vmem:[#allocation12] sm:$0xff] %v1363
    $region69: #{tpu_custom_call.1} parent=1 // pred_fallthru
      _
    // Predicated region
    $region70: #{tpu_custom_call.1} parent=1 // pred_check
      _
    $region71: #{tpu_custom_call.1} parent=1 // pred_check_branch
      %1366 = sbr.rel (0) target = $region73
    $region72: #{tpu_custom_call.1} parent=1 // pred_region
      %s1368 = ssub.s32 128, 128
      %1369 = vsyncadd [#allocation5], %s1368
      %s1371 = sshll.u32 [#allocation12], 4
      %s1372 = int_to_ptr.vmem [resolvable:$true] %s1371
      %1374 = dma.vmem_to_hbm [thread:$0]  %s1372, 128, %s10, [#allocation5]
    $region73: #{tpu_custom_call.1} parent=1 // pred_fallthru
      _
    // Predicated region
    $region74: #{tpu_custom_call.1} parent=1 // pred_check
      _
    $region75: #{tpu_custom_call.1} parent=1 // pred_check_branch
      %1376 = sbr.rel (0) target = $region77
    $region76: #{tpu_custom_call.1} parent=1 // pred_region
      %1377 = dma.done [#allocation5], 128
    $region77: #{tpu_custom_call.1} parent=1 // pred_fallthru
      _
    %1378 = vsyncpa [#allocation4], 1
    %1379 = vsyncpa [#allocation7], 1
    %1380 = vsyncpa [#allocation10], 1
    %1381 = vsyncpa [#allocation5], 1

</llo_original>
